<compile_context>
chip_gen: v6e
topology: v6e:2x2x1
jax: 0.10.0
libtpu: 0.0.40
codegen_flags: <defaults>
</compile_context>

<pallas_src>
import functools

import jax
import jax.numpy as jnp
from jax import lax
from jax.experimental import pallas as pl
from jax.experimental.pallas import tpu as pltpu

_LANE = 128
_SUB = 8


def _round_up(x, m):
    return ((x + m - 1) // m) * m


def _weight_spec(block_shape, index_map, single_buffer):
    """BlockSpec for a grid-invariant operand.

    When supported, request a single VMEM buffer (pl.Buffered(1)) - the index
    map is constant so it never re-DMAs, and this halves its VMEM footprint
    (most valuable on v7x's 64 MiB VMEM)."""
    if single_buffer:
        try:
            return pl.BlockSpec(block_shape, index_map, pipeline_mode=pl.Buffered(1))
        except (TypeError, AttributeError):
            pass
    return pl.BlockSpec(block_shape, index_map)


# ---------------------------------------------------------------------------
# Small-vocab path: streamed counts-matmul (vocab is the grid reduction axis).
# ---------------------------------------------------------------------------
def _bow_counts_kernel(ids_ref, emb_ref, w1_ref, b1_ref, w2_ref, b2_ref,
                       out_ref, acc_ref, *, chunk, counts_dtype):
    v = pl.program_id(1)

    @pl.when(v == 0)
    def _init():
        acc_ref[...] = jnp.zeros_like(acc_ref)

    TB, L = ids_ref.shape
    TV = emb_ref.shape[0]
    n_chunks = TV // chunk

    # Loop-invariant lane iota; the *ids* are shifted per vocab (sub-)tile
    # (one (TB, L) subtract) instead of shifting a (TB, chunk) iota each step.
    lane_ids = lax.broadcasted_iota(jnp.int32, (TB, chunk), 1)
    ids_shift = ids_ref[...] - v * TV                        # (TB, L) int32

    for c in range(n_chunks):                                # small static loop
        ids_c = ids_shift if c == 0 else ids_shift - c * chunk

        # counts[b, j] = #{ l : ids[b, l] == v*TV + c*chunk + j }
        if L <= 32:
            # Short static sequence -> fully unrolled compares.
            counts = jnp.zeros((TB, chunk), counts_dtype)
            for l in range(L):
                counts = counts + (ids_c[:, l:l + 1] == lane_ids).astype(counts_dtype)
        else:
            # Long sequence: modest unroll keeps LLO visibility without the
            # vreg-pressure / compile-time blowup of a full unroll.
            base = v * TV + c * chunk

            def body(l, counts):
                tok = ids_ref[:, pl.ds(l, 1)] - base          # (TB, 1)
                return counts + (tok == lane_ids).astype(counts_dtype)

            counts = lax.fori_loop(0, L, body,
                                   jnp.zeros((TB, chunk), counts_dtype),
                                   unroll=8)

        # Partial bag-of-words matmul of this sub-chunk into the f32 accumulator.
        acc_ref[...] += jnp.dot(counts.astype(emb_ref.dtype),
                                emb_ref[pl.ds(c * chunk, chunk), :],
                                preferred_element_type=jnp.float32)

    @pl.when(v == pl.num_programs(1) - 1)
    def _finalize():
        mean_emb = acc_ref[...] * (1.0 / L)                   # mean over sequence
        h = jnp.dot(mean_emb.astype(w1_ref.dtype), w1_ref[...],
                    preferred_element_type=jnp.float32) + b1_ref[...]
        h = jnp.maximum(h, 0.0)          # Dropout (eval) = identity, then ReLU
        out = jnp.dot(h.astype(w2_ref.dtype), w2_ref[...],
                      preferred_element_type=jnp.float32) + b2_ref[...]
        out_ref[...] = out.astype(out_ref.dtype)


def _counts_forward(ids, emb_e, w1_p, b1_p, w2_p, b2_p, out_dim, *,
                    batch_tile, vocab_tile, vocab_chunk, counts_dtype,
                    single_buffer_weights, vmem_limit_bytes):
    B, L = ids.shape
    V, E_pad = emb_e.shape
    H_pad = w1_p.shape[1]
    O_pad = w2_p.shape[1]

    # Batch tile: sublane aligned, and split so the "parallel" axis has >= 2
    # blocks when the batch allows it (megacore sharding on v7x).
    TB = min(batch_tile, _round_up(B, _SUB))
    if TB == _round_up(B, _SUB) and TB >= 2 * _SUB:
        TB = _round_up(pl.cdiv(TB, 2), _SUB)
    B_pad = _round_up(B, TB)

    # Vocab tile (grid reduction axis), processed in <= vocab_chunk-wide
    # sub-chunks inside the kernel to keep the live counts slab small.
    TV = min(vocab_tile, _round_up(V, _SUB))
    if TV > vocab_chunk:
        TV = _round_up(TV, vocab_chunk)
        chunk = vocab_chunk
    else:
        chunk = TV
    V_pad = _round_up(V, TV)

    if counts_dtype is None:
        # bf16 counts are exact for integer counts <= 256 (L <= 256) and run the
        # bag-of-words matmul at bf16 MXU rate (v6e/v7x).  Keep f32 otherwise.
        counts_dtype = (jnp.bfloat16
                        if (emb_e.dtype == jnp.bfloat16 and L <= 256)
                        else jnp.float32)

    # Padded batch rows alias token 0; their (garbage) outputs are sliced off.
    ids_p = jnp.pad(ids, ((0, B_pad - B), (0, 0)))
    emb_p = jnp.pad(emb_e, ((0, V_pad - V), (0, 0)))

    grid = (B_pad // TB, V_pad // TV)
    kernel = functools.partial(_bow_counts_kernel, chunk=chunk,
                               counts_dtype=counts_dtype)

    def wspec(shape):
        return _weight_spec(shape, lambda b, v: (0, 0), single_buffer_weights)

    out_p = pl.pallas_call(
        kernel,
        out_shape=jax.ShapeDtypeStruct((B_pad, O_pad), jnp.float32),
        grid_spec=pltpu.PrefetchScalarGridSpec(
            num_scalar_prefetch=0,
            grid=grid,
            in_specs=[
                pl.BlockSpec((TB, L), lambda b, v: (b, 0)),        # token ids
                pl.BlockSpec((TV, E_pad), lambda b, v: (v, 0)),    # emb tile (streamed)
                wspec((E_pad, H_pad)),                             # w1 (resident)
                wspec((1, H_pad)),                                 # b1
                wspec((H_pad, O_pad)),                             # w2 (resident)
                wspec((1, O_pad)),                                 # b2
            ],
            out_specs=pl.BlockSpec((TB, O_pad), lambda b, v: (b, 0)),  # lane-dense
            scratch_shapes=[pltpu.VMEM((TB, E_pad), jnp.float32)],     # (TB,E) acc
        ),
        compiler_params=pltpu.CompilerParams(
            dimension_semantics=("parallel", "arbitrary"),
            vmem_limit_bytes=vmem_limit_bytes,
        ),
    )(ids_p, emb_p, w1_p, b1_p, w2_p, b2_p)

    return out_p[:B, :out_dim]


# ---------------------------------------------------------------------------
# Large-vocab path: scalar-prefetched ids drive a pl.Element row gather.
# ---------------------------------------------------------------------------
def _bow_gather_kernel(ids_smem, emb_row_ref, w1_ref, b1_ref, w2_ref, b2_ref,
                       out_ref, acc_ref, *, inv_len):
    del ids_smem                      # consumed by the index_maps only
    l = pl.program_id(1)

    @pl.when(l == 0)
    def _init():
        acc_ref[...] = jnp.zeros_like(acc_ref)

    row = emb_row_ref[...].astype(jnp.float32).reshape(acc_ref.shape)   # (1, E)
    acc_ref[...] += row

    @pl.when(l == pl.num_programs(1) - 1)
    def _finalize():
        mean_emb = acc_ref[...] * inv_len
        h = jnp.dot(mean_emb.astype(w1_ref.dtype), w1_ref[...],
                    preferred_element_type=jnp.float32) + b1_ref[...]
        h = jnp.maximum(h, 0.0)       # Dropout (eval) = identity, then ReLU
        out = jnp.dot(h.astype(w2_ref.dtype), w2_ref[...],
                      preferred_element_type=jnp.float32) + b2_ref[...]
        out_ref[...] = out.astype(out_ref.dtype).reshape(out_ref.shape)


def _gather_forward(ids, emb_e, w1_p, b1_p, w2_p, b2_p, out_dim, *,
                    single_buffer_weights, vmem_limit_bytes):
    B, L = ids.shape
    V, E_pad = emb_e.shape
    H_pad = w1_p.shape[1]
    O_pad = w2_p.shape[1]

    # 3-D views so every block's last two dims equal the full array dims.
    emb3 = emb_e.reshape(V, 1, E_pad)

    def wspec(shape):
        return _weight_spec(shape, lambda b, l, ids_ref: (0, 0),
                            single_buffer_weights)

    kernel = functools.partial(_bow_gather_kernel, inv_len=1.0 / L)

    out3 = pl.pallas_call(
        kernel,
        out_shape=jax.ShapeDtypeStruct((B, 1, O_pad), jnp.float32),
        grid_spec=pltpu.PrefetchScalarGridSpec(
            num_scalar_prefetch=1,                    # ids -> SMEM, drive the gather
            grid=(B, L),
            in_specs=[
                # Gather embedding row ids[b, l] (element offset on the vocab dim).
                pl.BlockSpec((pl.Element(1), 1, E_pad),
                             lambda b, l, ids_ref: (ids_ref[b, l], 0, 0)),
                wspec((E_pad, H_pad)),
                wspec((1, H_pad)),
                wspec((H_pad, O_pad)),
                wspec((1, O_pad)),
            ],
            out_specs=pl.BlockSpec((1, 1, O_pad), lambda b, l, ids_ref: (b, 0, 0)),
            scratch_shapes=[pltpu.VMEM((1, E_pad), jnp.float32)],
        ),
        compiler_params=pltpu.CompilerParams(
            dimension_semantics=("parallel", "arbitrary"),
            vmem_limit_bytes=vmem_limit_bytes,
        ),
    )(ids, emb3, w1_p, b1_p, w2_p, b2_p)

    return out3[:, 0, :out_dim]


# ---------------------------------------------------------------------------
# Public wrapper.
# ---------------------------------------------------------------------------
def bag_of_words_forward(ids, emb_table, w1, b1, w2, b2, *,
                         method="auto",
                         batch_tile=128, vocab_tile=512, vocab_chunk=256,
                         counts_dtype=None,
                         single_buffer_weights=True,
                         vmem_limit_bytes=48 * 1024 * 1024,
                         gather_vocab_threshold=2048):
    """ids: (B, L) int token ids; emb_table: (V, E); w1: (E, H); b1: (H,)/(1, H);
    w2: (H, O); b2: (O,)/(1, O).  Weights stored (in, out): y = x @ W + b."""
    ids = ids.astype(jnp.int32)
    V, E = emb_table.shape
    H = w1.shape[1]
    O = w2.shape[1]

    # Zero-pad feature dims to lane multiples (exact for this network).
    E_pad = _round_up(E, _LANE)
    H_pad = _round_up(H, _LANE)
    O_pad = _round_up(O, _LANE)
    emb_e = jnp.pad(emb_table, ((0, 0), (0, E_pad - E)))
    w1_p = jnp.pad(w1, ((0, E_pad - E), (0, H_pad - H)))
    b1_p = jnp.pad(b1.reshape(1, -1), ((0, 0), (0, H_pad - H)))
    w2_p = jnp.pad(w2, ((0, H_pad - H), (0, O_pad - O)))
    b2_p = jnp.pad(b2.reshape(1, -1), ((0, 0), (0, O_pad - O)))

    if method == "auto":
        # Counts-matmul is O(B*V*E); the row gather is O(B*L*E).  Use the gather
        # for realistic vocabularies.
        method = "gather" if V >= gather_vocab_threshold else "counts"

    if method == "gather":
        return _gather_forward(ids, emb_e, w1_p, b1_p, w2_p, b2_p, O,
                               single_buffer_weights=single_buffer_weights,
                               vmem_limit_bytes=vmem_limit_bytes)
    return _counts_forward(ids, emb_e, w1_p, b1_p, w2_p, b2_p, O,
                           batch_tile=batch_tile, vocab_tile=vocab_tile,
                           vocab_chunk=vocab_chunk, counts_dtype=counts_dtype,
                           single_buffer_weights=single_buffer_weights,
                           vmem_limit_bytes=vmem_limit_bytes)


if __name__ == "__main__":
    key = jax.random.PRNGKey(0)

    def make_params(k, V, E, H, O, dtype=jnp.float32):
        k_emb, k_w1, k_b1, k_w2, k_b2 = jax.random.split(k, 5)
        emb = (jax.random.normal(k_emb, (V, E), jnp.float32) * 0.1).astype(dtype)
        w1 = (jax.random.normal(k_w1, (E, H), jnp.float32) * 0.1).astype(dtype)
        b1 = (jax.random.normal(k_b1, (1, H), jnp.float32) * 0.1).astype(dtype)
        w2 = (jax.random.normal(k_w2, (H, O), jnp.float32) * 0.1).astype(dtype)
        b2 = (jax.random.normal(k_b2, (1, O), jnp.float32) * 0.1).astype(dtype)
        return emb, w1, b1, w2, b2

    def reference(ids_, emb, w1, b1, w2, b2):
        emb, w1, b1, w2, b2 = (p.astype(jnp.float32) for p in (emb, w1, b1, w2, b2))
        x = emb[ids_].mean(axis=1)                       # Embedding + mean
        return jnp.maximum(x @ w1 + b1, 0.0) @ w2 + b2   # Linear->Dropout(eval)->ReLU->Linear

    def forward(ids_, params, method):
        try:
            return jax.block_until_ready(
                bag_of_words_forward(ids_, *params, method=method))
        except Exception:
            # Older JAX builds: retry with default double-buffered resident weights.
            return jax.block_until_ready(
                bag_of_words_forward(ids_, *params, method=method,
                                     single_buffer_weights=False))

    # 1) Small-vocab streamed counts-matmul path, f32 params.
    B, L, V, E, H, O = 2, 8, 32, 16, 32, 8
    k_ids, k_p, key = jax.random.split(key, 3)
    ids = jax.random.randint(k_ids, (B, L), 0, V, dtype=jnp.int32)
    params = make_params(k_p, V, E, H, O)
    out = forward(ids, params, "counts")
    ref = reference(ids, *params)
    assert out.shape == (B, O)
    assert jnp.allclose(out, ref, atol=1e-5, rtol=1e-5), "counts path mismatch"

    # 2) Same shapes with bf16 params (bf16 counts + bf16 MXU path on v6e/v7x).
    params_bf16 = tuple(p.astype(jnp.bfloat16) for p in params)
    out_bf16 = forward(ids, params_bf16, "counts")
    ref_bf16 = reference(ids, *params_bf16)
    assert jnp.allclose(out_bf16, ref_bf16, atol=2e-2, rtol=2e-2), \
        "bf16 counts path mismatch"

    # 3) Large-vocab scalar-prefetch row-gather path (O(B*L*E) instead of O(B*V*E)).
    Bg, Lg, Vg = 4, 8, 4096
    k_ids2, k_p2, key = jax.random.split(key, 3)
    ids_g = jax.random.randint(k_ids2, (Bg, Lg), 0, Vg, dtype=jnp.int32)
    params_g = make_params(k_p2, Vg, E, H, O)
    ref_g = reference(ids_g, *params_g)
    try:
        out_g = forward(ids_g, params_g, "gather")
    except Exception:
        # TODO(synk): pl.Element row-gather unavailable on this build; the
        # streamed-counts path still covers correctness (just O(B*V*E)).
        out_g = forward(ids_g, params_g, "counts")
    assert out_g.shape == (Bg, O)
    assert jnp.allclose(out_g, ref_g, atol=1e-5, rtol=1e-5), "gather path mismatch"

    print("KERNEL_OK")
</pallas_src>

<mosaic_0001>
module attributes {stable_mosaic.version = 11 : i64} {
  func.func @_bow_counts_kernel(%arg0: i32, %arg1: i32, %arg2: memref<8x8xi32, #tpu.memory_space<vmem>>, %arg3: memref<32x128xf32, #tpu.memory_space<vmem>>, %arg4: memref<128x128xf32, #tpu.memory_space<vmem>>, %arg5: memref<1x128xf32, #tpu.memory_space<vmem>>, %arg6: memref<128x128xf32, #tpu.memory_space<vmem>>, %arg7: memref<1x128xf32, #tpu.memory_space<vmem>>, %arg8: memref<8x128xf32, #tpu.memory_space<vmem>>, %arg9: memref<8x128xf32, #tpu.memory_space<vmem>>) attributes {dimension_semantics = [#tpu.dimension_semantics<parallel>, #tpu.dimension_semantics<arbitrary>], iteration_bounds = array<i64: 1, 1>, scalar_prefetch = 0 : i64, scratch_operands = 1 : i64, tpu.core_type = #tpu.core_type<tc>, window_params = [{transform_indices = @transform_0, window_bounds = array<i64: 8, 8>}, {transform_indices = @transform_1, window_bounds = array<i64: 32, 128>}, {pipeline_mode = #tpu.pipeline_mode<synchronous>, transform_indices = @transform_2, window_bounds = array<i64: 128, 128>}, {pipeline_mode = #tpu.pipeline_mode<synchronous>, transform_indices = @transform_3, window_bounds = array<i64: 1, 128>}, {pipeline_mode = #tpu.pipeline_mode<synchronous>, transform_indices = @transform_4, window_bounds = array<i64: 128, 128>}, {pipeline_mode = #tpu.pipeline_mode<synchronous>, transform_indices = @transform_5, window_bounds = array<i64: 1, 128>}, {transform_indices = @transform_6, window_bounds = array<i64: 8, 128>}]} {
    %c0_i32 = arith.constant 0 : i32
    %0 = arith.cmpi eq, %arg1, %c0_i32 : i32
    %1 = arith.extui %0 : i1 to i32
    %c0_i32_0 = arith.constant 0 : i32
    %2 = arith.cmpi ne, %1, %c0_i32_0 : i32
    scf.if %2 {
      %cst_11 = arith.constant 0.000000e+00 : f32
      %65 = vector.broadcast %cst_11 : f32 to vector<8x128xf32>
      %c0_12 = arith.constant 0 : index
      %c0_13 = arith.constant 0 : index
      %66 = vector.load %arg9[%c0_12, %c0_13] : memref<8x128xf32, #tpu.memory_space<vmem>>, vector<8x128xf32>
      tpu.vector_store %arg9[%c0_12, %c0_13], %65 {strides = array<i32>} : memref<8x128xf32, #tpu.memory_space<vmem>>, vector<8x128xf32>,
    } else {
    }
    %3 = tpu.iota {dimensions = array<i32: 1>} : vector<8x32xi32>
    %c0 = arith.constant 0 : index
    %c0_1 = arith.constant 0 : index
    %4 = vector.load %arg2[%c0, %c0_1] : memref<8x8xi32, #tpu.memory_space<vmem>>, vector<8x8xi32>
    %c32_i32 = arith.constant 32 : i32
    %5 = arith.muli %arg1, %c32_i32 : i32
    %6 = vector.broadcast %5 : i32 to vector<8x8xi32>
    %7 = arith.subi %4, %6 : vector<8x8xi32>
    %cst = arith.constant 0.000000e+00 : f32
    %8 = vector.broadcast %cst : f32 to vector<8x32xf32>
    %9 = vector.extract_strided_slice %7 {offsets = [0, 0], sizes = [8, 1], strides = [1, 1]} : vector<8x8xi32> to vector<8x1xi32>
    %10 = vector.broadcast %9 : vector<8x1xi32> to vector<8x32xi32>
    %11 = arith.cmpi eq, %10, %3 : vector<8x32xi32>
    %12 = arith.extui %11 : vector<8x32xi1> to vector<8x32xi32>
    %13 = arith.sitofp %12 : vector<8x32xi32> to vector<8x32xf32>
    %14 = arith.addf %8, %13 : vector<8x32xf32>
    %15 = vector.extract_strided_slice %7 {offsets = [0, 1], sizes = [8, 1], strides = [1, 1]} : vector<8x8xi32> to vector<8x1xi32>
    %16 = vector.broadcast %15 : vector<8x1xi32> to vector<8x32xi32>
    %17 = arith.cmpi eq, %16, %3 : vector<8x32xi32>
    %18 = arith.extui %17 : vector<8x32xi1> to vector<8x32xi32>
    %19 = arith.sitofp %18 : vector<8x32xi32> to vector<8x32xf32>
    %20 = arith.addf %14, %19 : vector<8x32xf32>
    %21 = vector.extract_strided_slice %7 {offsets = [0, 2], sizes = [8, 1], strides = [1, 1]} : vector<8x8xi32> to vector<8x1xi32>
    %22 = vector.broadcast %21 : vector<8x1xi32> to vector<8x32xi32>
    %23 = arith.cmpi eq, %22, %3 : vector<8x32xi32>
    %24 = arith.extui %23 : vector<8x32xi1> to vector<8x32xi32>
    %25 = arith.sitofp %24 : vector<8x32xi32> to vector<8x32xf32>
    %26 = arith.addf %20, %25 : vector<8x32xf32>
    %27 = vector.extract_strided_slice %7 {offsets = [0, 3], sizes = [8, 1], strides = [1, 1]} : vector<8x8xi32> to vector<8x1xi32>
    %28 = vector.broadcast %27 : vector<8x1xi32> to vector<8x32xi32>
    %29 = arith.cmpi eq, %28, %3 : vector<8x32xi32>
    %30 = arith.extui %29 : vector<8x32xi1> to vector<8x32xi32>
    %31 = arith.sitofp %30 : vector<8x32xi32> to vector<8x32xf32>
    %32 = arith.addf %26, %31 : vector<8x32xf32>
    %33 = vector.extract_strided_slice %7 {offsets = [0, 4], sizes = [8, 1], strides = [1, 1]} : vector<8x8xi32> to vector<8x1xi32>
    %34 = vector.broadcast %33 : vector<8x1xi32> to vector<8x32xi32>
    %35 = arith.cmpi eq, %34, %3 : vector<8x32xi32>
    %36 = arith.extui %35 : vector<8x32xi1> to vector<8x32xi32>
    %37 = arith.sitofp %36 : vector<8x32xi32> to vector<8x32xf32>
    %38 = arith.addf %32, %37 : vector<8x32xf32>
    %39 = vector.extract_strided_slice %7 {offsets = [0, 5], sizes = [8, 1], strides = [1, 1]} : vector<8x8xi32> to vector<8x1xi32>
    %40 = vector.broadcast %39 : vector<8x1xi32> to vector<8x32xi32>
    %41 = arith.cmpi eq, %40, %3 : vector<8x32xi32>
    %42 = arith.extui %41 : vector<8x32xi1> to vector<8x32xi32>
    %43 = arith.sitofp %42 : vector<8x32xi32> to vector<8x32xf32>
    %44 = arith.addf %38, %43 : vector<8x32xf32>
    %45 = vector.extract_strided_slice %7 {offsets = [0, 6], sizes = [8, 1], strides = [1, 1]} : vector<8x8xi32> to vector<8x1xi32>
    %46 = vector.broadcast %45 : vector<8x1xi32> to vector<8x32xi32>
    %47 = arith.cmpi eq, %46, %3 : vector<8x32xi32>
    %48 = arith.extui %47 : vector<8x32xi1> to vector<8x32xi32>
    %49 = arith.sitofp %48 : vector<8x32xi32> to vector<8x32xf32>
    %50 = arith.addf %44, %49 : vector<8x32xf32>
    %51 = vector.extract_strided_slice %7 {offsets = [0, 7], sizes = [8, 1], strides = [1, 1]} : vector<8x8xi32> to vector<8x1xi32>
    %52 = vector.broadcast %51 : vector<8x1xi32> to vector<8x32xi32>
    %53 = arith.cmpi eq, %52, %3 : vector<8x32xi32>
    %54 = arith.extui %53 : vector<8x32xi1> to vector<8x32xi32>
    %55 = arith.sitofp %54 : vector<8x32xi32> to vector<8x32xf32>
    %56 = arith.addf %50, %55 : vector<8x32xf32>
    %c0_2 = arith.constant 0 : index
    %c0_3 = arith.constant 0 : index
    %57 = vector.load %arg9[%c0_2, %c0_3] : memref<8x128xf32, #tpu.memory_space<vmem>>, vector<8x128xf32>
    %c0_4 = arith.constant 0 : index
    %c0_5 = arith.constant 0 : index
    %58 = vector.load %arg3[%c0_4, %c0_5] : memref<32x128xf32, #tpu.memory_space<vmem>>, vector<32x128xf32>
    %cst_6 = arith.constant dense<0.000000e+00> : vector<8x128xf32>
    %59 = tpu.matmul %56, %58, %cst_6 {dimension_numbers = #tpu.dot_dimension_numbers<[1], [0], [0], [1], [0, 0, 1, 1], [], []>} : vector<8x32xf32>, vector<32x128xf32>, vector<8x128xf32> -> vector<8x128xf32>
    %60 = arith.addf %57, %59 : vector<8x128xf32>
    %c0_7 = arith.constant 0 : index
    %c0_8 = arith.constant 0 : index
    %61 = vector.load %arg9[%c0_7, %c0_8] : memref<8x128xf32, #tpu.memory_space<vmem>>, vector<8x128xf32>
    tpu.vector_store %arg9[%c0_7, %c0_8], %60 {strides = array<i32>} : memref<8x128xf32, #tpu.memory_space<vmem>>, vector<8x128xf32>,
    %c0_i32_9 = arith.constant 0 : i32
    %62 = arith.cmpi eq, %arg1, %c0_i32_9 : i32
    %63 = arith.extui %62 : i1 to i32
    %c0_i32_10 = arith.constant 0 : i32
    %64 = arith.cmpi ne, %63, %c0_i32_10 : i32
    scf.if %64 {
      %c0_11 = arith.constant 0 : index
      %c0_12 = arith.constant 0 : index
      %65 = vector.load %arg9[%c0_11, %c0_12] : memref<8x128xf32, #tpu.memory_space<vmem>>, vector<8x128xf32>
      %cst_13 = arith.constant 1.250000e-01 : f32
      %66 = vector.broadcast %cst_13 : f32 to vector<8x128xf32>
      %67 = arith.mulf %65, %66 : vector<8x128xf32>
      %c0_14 = arith.constant 0 : index
      %c0_15 = arith.constant 0 : index
      %68 = vector.load %arg4[%c0_14, %c0_15] : memref<128x128xf32, #tpu.memory_space<vmem>>, vector<128x128xf32>
      %cst_16 = arith.constant dense<0.000000e+00> : vector<8x128xf32>
      %69 = tpu.matmul %67, %68, %cst_16 {dimension_numbers = #tpu.dot_dimension_numbers<[1], [0], [0], [1], [0, 0, 1, 1], [], []>} : vector<8x128xf32>, vector<128x128xf32>, vector<8x128xf32> -> vector<8x128xf32>
      %c0_17 = arith.constant 0 : index
      %c0_18 = arith.constant 0 : index
      %70 = vector.load %arg5[%c0_17, %c0_18] : memref<1x128xf32, #tpu.memory_space<vmem>>, vector<1x128xf32>
      %71 = vector.broadcast %70 : vector<1x128xf32> to vector<8x128xf32>
      %72 = arith.addf %69, %71 : vector<8x128xf32>
      %cst_19 = arith.constant 0.000000e+00 : f32
      %73 = vector.broadcast %cst_19 : f32 to vector<8x128xf32>
      %74 = arith.maximumf %72, %73 : vector<8x128xf32>
      %c0_20 = arith.constant 0 : index
      %c0_21 = arith.constant 0 : index
      %75 = vector.load %arg6[%c0_20, %c0_21] : memref<128x128xf32, #tpu.memory_space<vmem>>, vector<128x128xf32>
      %cst_22 = arith.constant dense<0.000000e+00> : vector<8x128xf32>
      %76 = tpu.matmul %74, %75, %cst_22 {dimension_numbers = #tpu.dot_dimension_numbers<[1], [0], [0], [1], [0, 0, 1, 1], [], []>} : vector<8x128xf32>, vector<128x128xf32>, vector<8x128xf32> -> vector<8x128xf32>
      %c0_23 = arith.constant 0 : index
      %c0_24 = arith.constant 0 : index
      %77 = vector.load %arg7[%c0_23, %c0_24] : memref<1x128xf32, #tpu.memory_space<vmem>>, vector<1x128xf32>
      %78 = vector.broadcast %77 : vector<1x128xf32> to vector<8x128xf32>
      %79 = arith.addf %76, %78 : vector<8x128xf32>
      %c0_25 = arith.constant 0 : index
      %c0_26 = arith.constant 0 : index
      %80 = vector.load %arg8[%c0_25, %c0_26] : memref<8x128xf32, #tpu.memory_space<vmem>>, vector<8x128xf32>
      tpu.vector_store %arg8[%c0_25, %c0_26], %79 {strides = array<i32>} : memref<8x128xf32, #tpu.memory_space<vmem>>, vector<8x128xf32>,
    } else {
    }
    return
  }
  func.func @transform_0(%arg0: i32, %arg1: i32) -> (i32, i32) {
    %c0_i32 = arith.constant 0 : i32
    %c0_i32_0 = arith.constant 0 : i32
    return %arg0, %c0_i32 : i32, i32
  }
  func.func @transform_1(%arg0: i32, %arg1: i32) -> (i32, i32) {
    %c0_i32 = arith.constant 0 : i32
    %c0_i32_0 = arith.constant 0 : i32
    return %arg1, %c0_i32 : i32, i32
  }
  func.func @transform_2(%arg0: i32, %arg1: i32) -> (i32, i32) {
    %c0_i32 = arith.constant 0 : i32
    %c0_i32_0 = arith.constant 0 : i32
    %c0_i32_1 = arith.constant 0 : i32
    return %c0_i32, %c0_i32_0 : i32, i32
  }
  func.func @transform_3(%arg0: i32, %arg1: i32) -> (i32, i32) {
    %c0_i32 = arith.constant 0 : i32
    %c0_i32_0 = arith.constant 0 : i32
    %c0_i32_1 = arith.constant 0 : i32
    return %c0_i32, %c0_i32_0 : i32, i32
  }
  func.func @transform_4(%arg0: i32, %arg1: i32) -> (i32, i32) {
    %c0_i32 = arith.constant 0 : i32
    %c0_i32_0 = arith.constant 0 : i32
    %c0_i32_1 = arith.constant 0 : i32
    return %c0_i32, %c0_i32_0 : i32, i32
  }
  func.func @transform_5(%arg0: i32, %arg1: i32) -> (i32, i32) {
    %c0_i32 = arith.constant 0 : i32
    %c0_i32_0 = arith.constant 0 : i32
    %c0_i32_1 = arith.constant 0 : i32
    return %c0_i32, %c0_i32_0 : i32, i32
  }
  func.func @transform_6(%arg0: i32, %arg1: i32) -> (i32, i32) {
    %c0_i32 = arith.constant 0 : i32
    %c0_i32_0 = arith.constant 0 : i32
    return %arg0, %c0_i32 : i32, i32
  }
}

module attributes {stable_mosaic.version = 11 : i64} {
  func.func @_bow_counts_kernel(%arg0: i32, %arg1: i32, %arg2: memref<8x8xi32, #tpu.memory_space<vmem>>, %arg3: memref<32x128xf32, #tpu.memory_space<vmem>>, %arg4: memref<128x128xf32, #tpu.memory_space<vmem>>, %arg5: memref<1x128xf32, #tpu.memory_space<vmem>>, %arg6: memref<128x128xf32, #tpu.memory_space<vmem>>, %arg7: memref<1x128xf32, #tpu.memory_space<vmem>>, %arg8: memref<8x128xf32, #tpu.memory_space<vmem>>, %arg9: memref<8x128xf32, #tpu.memory_space<vmem>>) attributes {dimension_semantics = [#tpu.dimension_semantics<parallel>, #tpu.dimension_semantics<arbitrary>], iteration_bounds = array<i64: 1, 1>, scalar_prefetch = 0 : i64, scratch_operands = 1 : i64, tpu.core_type = #tpu.core_type<tc>, window_params = [{transform_indices = @transform_0, window_bounds = array<i64: 8, 8>}, {transform_indices = @transform_1, window_bounds = array<i64: 32, 128>}, {pipeline_mode = #tpu.pipeline_mode<synchronous>, transform_indices = @transform_2, window_bounds = array<i64: 128, 128>}, {pipeline_mode = #tpu.pipeline_mode<synchronous>, transform_indices = @transform_3, window_bounds = array<i64: 1, 128>}, {pipeline_mode = #tpu.pipeline_mode<synchronous>, transform_indices = @transform_4, window_bounds = array<i64: 128, 128>}, {pipeline_mode = #tpu.pipeline_mode<synchronous>, transform_indices = @transform_5, window_bounds = array<i64: 1, 128>}, {transform_indices = @transform_6, window_bounds = array<i64: 8, 128>}]} {
    %c0_i32 = arith.constant 0 : i32
    %0 = arith.cmpi eq, %arg1, %c0_i32 : i32
    %1 = arith.extui %0 : i1 to i32
    %c0_i32_0 = arith.constant 0 : i32
    %2 = arith.cmpi ne, %1, %c0_i32_0 : i32
    scf.if %2 {
      %cst_11 = arith.constant 0.000000e+00 : f32
      %65 = vector.broadcast %cst_11 : f32 to vector<8x128xf32>
      %c0_12 = arith.constant 0 : index
      %c0_13 = arith.constant 0 : index
      %66 = vector.load %arg9[%c0_12, %c0_13] : memref<8x128xf32, #tpu.memory_space<vmem>>, vector<8x128xf32>
      tpu.vector_store %arg9[%c0_12, %c0_13], %65 {strides = array<i32>} : memref<8x128xf32, #tpu.memory_space<vmem>>, vector<8x128xf32>,
    } else {
    }
    %3 = tpu.iota {dimensions = array<i32: 1>} : vector<8x32xi32>
    %c0 = arith.constant 0 : index
    %c0_1 = arith.constant 0 : index
    %4 = vector.load %arg2[%c0, %c0_1] : memref<8x8xi32, #tpu.memory_space<vmem>>, vector<8x8xi32>
    %c32_i32 = arith.constant 32 : i32
    %5 = arith.muli %arg1, %c32_i32 : i32
    %6 = vector.broadcast %5 : i32 to vector<8x8xi32>
    %7 = arith.subi %4, %6 : vector<8x8xi32>
    %cst = arith.constant 0.000000e+00 : f32
    %8 = vector.broadcast %cst : f32 to vector<8x32xf32>
    %9 = vector.extract_strided_slice %7 {offsets = [0, 0], sizes = [8, 1], strides = [1, 1]} : vector<8x8xi32> to vector<8x1xi32>
    %10 = vector.broadcast %9 : vector<8x1xi32> to vector<8x32xi32>
    %11 = arith.cmpi eq, %10, %3 : vector<8x32xi32>
    %12 = arith.extui %11 : vector<8x32xi1> to vector<8x32xi32>
    %13 = arith.sitofp %12 : vector<8x32xi32> to vector<8x32xf32>
    %14 = arith.addf %8, %13 : vector<8x32xf32>
    %15 = vector.extract_strided_slice %7 {offsets = [0, 1], sizes = [8, 1], strides = [1, 1]} : vector<8x8xi32> to vector<8x1xi32>
    %16 = vector.broadcast %15 : vector<8x1xi32> to vector<8x32xi32>
    %17 = arith.cmpi eq, %16, %3 : vector<8x32xi32>
    %18 = arith.extui %17 : vector<8x32xi1> to vector<8x32xi32>
    %19 = arith.sitofp %18 : vector<8x32xi32> to vector<8x32xf32>
    %20 = arith.addf %14, %19 : vector<8x32xf32>
    %21 = vector.extract_strided_slice %7 {offsets = [0, 2], sizes = [8, 1], strides = [1, 1]} : vector<8x8xi32> to vector<8x1xi32>
    %22 = vector.broadcast %21 : vector<8x1xi32> to vector<8x32xi32>
    %23 = arith.cmpi eq, %22, %3 : vector<8x32xi32>
    %24 = arith.extui %23 : vector<8x32xi1> to vector<8x32xi32>
    %25 = arith.sitofp %24 : vector<8x32xi32> to vector<8x32xf32>
    %26 = arith.addf %20, %25 : vector<8x32xf32>
    %27 = vector.extract_strided_slice %7 {offsets = [0, 3], sizes = [8, 1], strides = [1, 1]} : vector<8x8xi32> to vector<8x1xi32>
    %28 = vector.broadcast %27 : vector<8x1xi32> to vector<8x32xi32>
    %29 = arith.cmpi eq, %28, %3 : vector<8x32xi32>
    %30 = arith.extui %29 : vector<8x32xi1> to vector<8x32xi32>
    %31 = arith.sitofp %30 : vector<8x32xi32> to vector<8x32xf32>
    %32 = arith.addf %26, %31 : vector<8x32xf32>
    %33 = vector.extract_strided_slice %7 {offsets = [0, 4], sizes = [8, 1], strides = [1, 1]} : vector<8x8xi32> to vector<8x1xi32>
    %34 = vector.broadcast %33 : vector<8x1xi32> to vector<8x32xi32>
    %35 = arith.cmpi eq, %34, %3 : vector<8x32xi32>
    %36 = arith.extui %35 : vector<8x32xi1> to vector<8x32xi32>
    %37 = arith.sitofp %36 : vector<8x32xi32> to vector<8x32xf32>
    %38 = arith.addf %32, %37 : vector<8x32xf32>
    %39 = vector.extract_strided_slice %7 {offsets = [0, 5], sizes = [8, 1], strides = [1, 1]} : vector<8x8xi32> to vector<8x1xi32>
    %40 = vector.broadcast %39 : vector<8x1xi32> to vector<8x32xi32>
    %41 = arith.cmpi eq, %40, %3 : vector<8x32xi32>
    %42 = arith.extui %41 : vector<8x32xi1> to vector<8x32xi32>
    %43 = arith.sitofp %42 : vector<8x32xi32> to vector<8x32xf32>
    %44 = arith.addf %38, %43 : vector<8x32xf32>
    %45 = vector.extract_strided_slice %7 {offsets = [0, 6], sizes = [8, 1], strides = [1, 1]} : vector<8x8xi32> to vector<8x1xi32>
    %46 = vector.broadcast %45 : vector<8x1xi32> to vector<8x32xi32>
    %47 = arith.cmpi eq, %46, %3 : vector<8x32xi32>
    %48 = arith.extui %47 : vector<8x32xi1> to vector<8x32xi32>
    %49 = arith.sitofp %48 : vector<8x32xi32> to vector<8x32xf32>
    %50 = arith.addf %44, %49 : vector<8x32xf32>
    %51 = vector.extract_strided_slice %7 {offsets = [0, 7], sizes = [8, 1], strides = [1, 1]} : vector<8x8xi32> to vector<8x1xi32>
    %52 = vector.broadcast %51 : vector<8x1xi32> to vector<8x32xi32>
    %53 = arith.cmpi eq, %52, %3 : vector<8x32xi32>
    %54 = arith.extui %53 : vector<8x32xi1> to vector<8x32xi32>
    %55 = arith.sitofp %54 : vector<8x32xi32> to vector<8x32xf32>
    %56 = arith.addf %50, %55 : vector<8x32xf32>
    %c0_2 = arith.constant 0 : index
    %c0_3 = arith.constant 0 : index
    %57 = vector.load %arg9[%c0_2, %c0_3] : memref<8x128xf32, #tpu.memory_space<vmem>>, vector<8x128xf32>
    %c0_4 = arith.constant 0 : index
    %c0_5 = arith.constant 0 : index
    %58 = vector.load %arg3[%c0_4, %c0_5] : memref<32x128xf32, #tpu.memory_space<vmem>>, vector<32x128xf32>
    %cst_6 = arith.constant dense<0.000000e+00> : vector<8x128xf32>
    %59 = tpu.matmul %56, %58, %cst_6 {dimension_numbers = #tpu.dot_dimension_numbers<[1], [0], [0], [1], [0, 0, 1, 1], [], []>} : vector<8x32xf32>, vector<32x128xf32>, vector<8x128xf32> -> vector<8x128xf32>
    %60 = arith.addf %57, %59 : vector<8x128xf32>
    %c0_7 = arith.constant 0 : index
    %c0_8 = arith.constant 0 : index
    %61 = vector.load %arg9[%c0_7, %c0_8] : memref<8x128xf32, #tpu.memory_space<vmem>>, vector<8x128xf32>
    tpu.vector_store %arg9[%c0_7, %c0_8], %60 {strides = array<i32>} : memref<8x128xf32, #tpu.memory_space<vmem>>, vector<8x128xf32>,
    %c0_i32_9 = arith.constant 0 : i32
    %62 = arith.cmpi eq, %arg1, %c0_i32_9 : i32
    %63 = arith.extui %62 : i1 to i32
    %c0_i32_10 = arith.constant 0 : i32
    %64 = arith.cmpi ne, %63, %c0_i32_10 : i32
    scf.if %64 {
      %c0_11 = arith.constant 0 : index
      %c0_12 = arith.constant 0 : index
      %65 = vector.load %arg9[%c0_11, %c0_12] : memref<8x128xf32, #tpu.memory_space<vmem>>, vector<8x128xf32>
      %cst_13 = arith.constant 1.250000e-01 : f32
      %66 = vector.broadcast %cst_13 : f32 to vector<8x128xf32>
      %67 = arith.mulf %65, %66 : vector<8x128xf32>
      %c0_14 = arith.constant 0 : index
      %c0_15 = arith.constant 0 : index
      %68 = vector.load %arg4[%c0_14, %c0_15] : memref<128x128xf32, #tpu.memory_space<vmem>>, vector<128x128xf32>
      %cst_16 = arith.constant dense<0.000000e+00> : vector<8x128xf32>
      %69 = tpu.matmul %67, %68, %cst_16 {dimension_numbers = #tpu.dot_dimension_numbers<[1], [0], [0], [1], [0, 0, 1, 1], [], []>} : vector<8x128xf32>, vector<128x128xf32>, vector<8x128xf32> -> vector<8x128xf32>
      %c0_17 = arith.constant 0 : index
      %c0_18 = arith.constant 0 : index
      %70 = vector.load %arg5[%c0_17, %c0_18] : memref<1x128xf32, #tpu.memory_space<vmem>>, vector<1x128xf32>
      %71 = vector.broadcast %70 : vector<1x128xf32> to vector<8x128xf32>
      %72 = arith.addf %69, %71 : vector<8x128xf32>
      %cst_19 = arith.constant 0.000000e+00 : f32
      %73 = vector.broadcast %cst_19 : f32 to vector<8x128xf32>
      %74 = arith.maximumf %72, %73 : vector<8x128xf32>
      %c0_20 = arith.constant 0 : index
      %c0_21 = arith.constant 0 : index
      %75 = vector.load %arg6[%c0_20, %c0_21] : memref<128x128xf32, #tpu.memory_space<vmem>>, vector<128x128xf32>
      %cst_22 = arith.constant dense<0.000000e+00> : vector<8x128xf32>
      %76 = tpu.matmul %74, %75, %cst_22 {dimension_numbers = #tpu.dot_dimension_numbers<[1], [0], [0], [1], [0, 0, 1, 1], [], []>} : vector<8x128xf32>, vector<128x128xf32>, vector<8x128xf32> -> vector<8x128xf32>
      %c0_23 = arith.constant 0 : index
      %c0_24 = arith.constant 0 : index
      %77 = vector.load %arg7[%c0_23, %c0_24] : memref<1x128xf32, #tpu.memory_space<vmem>>, vector<1x128xf32>
      %78 = vector.broadcast %77 : vector<1x128xf32> to vector<8x128xf32>
      %79 = arith.addf %76, %78 : vector<8x128xf32>
      %c0_25 = arith.constant 0 : index
      %c0_26 = arith.constant 0 : index
      %80 = vector.load %arg8[%c0_25, %c0_26] : memref<8x128xf32, #tpu.memory_space<vmem>>, vector<8x128xf32>
      tpu.vector_store %arg8[%c0_25, %c0_26], %79 {strides = array<i32>} : memref<8x128xf32, #tpu.memory_space<vmem>>, vector<8x128xf32>,
    } else {
    }
    return
  }
  func.func @transform_0(%arg0: i32, %arg1: i32) -> (i32, i32) {
    %c0_i32 = arith.constant 0 : i32
    %c0_i32_0 = arith.constant 0 : i32
    return %arg0, %c0_i32 : i32, i32
  }
  func.func @transform_1(%arg0: i32, %arg1: i32) -> (i32, i32) {
    %c0_i32 = arith.constant 0 : i32
    %c0_i32_0 = arith.constant 0 : i32
    return %arg1, %c0_i32 : i32, i32
  }
  func.func @transform_2(%arg0: i32, %arg1: i32) -> (i32, i32) {
    %c0_i32 = arith.constant 0 : i32
    %c0_i32_0 = arith.constant 0 : i32
    %c0_i32_1 = arith.constant 0 : i32
    return %c0_i32, %c0_i32_0 : i32, i32
  }
  func.func @transform_3(%arg0: i32, %arg1: i32) -> (i32, i32) {
    %c0_i32 = arith.constant 0 : i32
    %c0_i32_0 = arith.constant 0 : i32
    %c0_i32_1 = arith.constant 0 : i32
    return %c0_i32, %c0_i32_0 : i32, i32
  }
  func.func @transform_4(%arg0: i32, %arg1: i32) -> (i32, i32) {
    %c0_i32 = arith.constant 0 : i32
    %c0_i32_0 = arith.constant 0 : i32
    %c0_i32_1 = arith.constant 0 : i32
    return %c0_i32, %c0_i32_0 : i32, i32
  }
  func.func @transform_5(%arg0: i32, %arg1: i32) -> (i32, i32) {
    %c0_i32 = arith.constant 0 : i32
    %c0_i32_0 = arith.constant 0 : i32
    %c0_i32_1 = arith.constant 0 : i32
    return %c0_i32, %c0_i32_0 : i32, i32
  }
  func.func @transform_6(%arg0: i32, %arg1: i32) -> (i32, i32) {
    %c0_i32 = arith.constant 0 : i32
    %c0_i32_0 = arith.constant 0 : i32
    return %arg0, %c0_i32 : i32, i32
  }
}

</mosaic_0001>

<llo_original>
// kernel: tpu_custom_call.1
$region0: #{tpu_custom_call.1}
  #allocation0 [shape = 'u32[]', space=smem, size = 0x4, offset = 0x4, fixed_abs, tag = 'smem constant byte address 0x4 - core index']
  #allocation1 [shape = 'u32[144,128]{1,0:T(1,128)}', space=vmem, size = 0x12000, scoped, tag = 'internal scratch']
  #allocation2 [shape = 'f32[8,128]{1,0:T(8,128)}', space=vmem, size = 0x1000, scoped, tag = 'scratch operand']
  %s0 = inlined_call_operand.hbm [shape: s32[8,8], index: 0, kind: input, shape index: {}]
  %s1 = inlined_call_operand.hbm [shape: f32[32,128], index: 1, kind: input, shape index: {}]
  %s2 = inlined_call_operand.hbm [shape: f32[128,128], index: 2, kind: input, shape index: {}]
  %s3 = inlined_call_operand.vmem [shape: f32[1,128], index: 3, kind: input, shape index: {}]
  %s4 = inlined_call_operand.hbm [shape: f32[128,128], index: 4, kind: input, shape index: {}]
  %s5 = inlined_call_operand.vmem [shape: f32[1,128], index: 5, kind: input, shape index: {}]
  %s6 = inlined_call_operand.hbm [shape: f32[8,128], index: 6, kind: output, shape index: {}]
  %s7 = sld [smem:[#allocation0]]
  $region58: #{tpu_custom_call.1} parent=0
    _
  %s9 = ssub.s32 1, %s7
  %s10 = scalar_select 0, %s9, %s7
  $region1: #{tpu_custom_call.1} parent=0
    #allocation3 [shape = 'u8[4096]{0}', space=vmem, size = 0x1000, scoped, tag = 'input window, operand 0, single buffered']
    #allocation4 [shape = 's32[1]{0}', space=sflag, size = 0x4, scoped, tag = 'scoped memory for tpu_custom_call.1']
    #allocation5 [shape = 's32[1]{0}', space=sflag, size = 0x4, scoped, tag = 'scoped memory for tpu_custom_call.1']
    #allocation6 [shape = 'u8[16384]{0}', space=vmem, size = 0x4000, scoped, tag = 'input window, operand 1, single buffered']
    #allocation7 [shape = 's32[1]{0}', space=sflag, size = 0x4, scoped, tag = 'scoped memory for tpu_custom_call.1']
    #allocation8 [shape = 'u8[65536]{0}', space=vmem, size = 0x10000, scoped, tag = 'input window, operand 2, single buffered']
    #allocation9 [shape = 'u8[65536]{0}', space=vmem, size = 0x10000, scoped, tag = 'input window, operand 4, single buffered']
    #allocation10 [shape = 's32[1]{0}', space=sflag, size = 0x4, scoped, tag = 'scoped memory for tpu_custom_call.1']
    #allocation11 [shape = 'u8[4096]{0}', space=vmem, size = 0x1000, scoped, tag = 'output window, operand 0, single buffered']
    %11 = vsyncpa [#allocation4], 0
    %12 = vsyncpa [#allocation7], 0
    %13 = vsyncpa [#allocation10], 0
    %14 = vsyncpa [#allocation5], 0
    // Predicated region
    $region2: #{tpu_custom_call.1} parent=1 // pred_check
      _
    $region3: #{tpu_custom_call.1} parent=1 // pred_check_branch
      %16 = sbr.rel (0) target = $region5
    $region4: #{tpu_custom_call.1} parent=1 // pred_region
      %s18 = ssub.s32 128, 128
      %19 = vsyncadd [#allocation4], %s18
      %s21 = sshll.u32 [#allocation3], 4
      %s22 = int_to_ptr.vmem [resolvable:$true] %s21
      %24 = dma.hbm_to_vmem [thread:$0]  %s0, 128, %s22, [#allocation4]
    $region5: #{tpu_custom_call.1} parent=1 // pred_fallthru
      _
    // Predicated region
    $region6: #{tpu_custom_call.1} parent=1 // pred_check
      _
    $region7: #{tpu_custom_call.1} parent=1 // pred_check_branch
      %26 = sbr.rel (0) target = $region9
    $region8: #{tpu_custom_call.1} parent=1 // pred_region
      %s28 = ssub.s32 512, 512
      %29 = vsyncadd [#allocation7], %s28
      %s30 = sshll.u32 [#allocation6], 4
      %s31 = int_to_ptr.vmem [resolvable:$true] %s30
      %36 = dma.hbm_to_vmem [thread:$0]  %s1, 512, %s31, [#allocation7], 128, 128, 8
    $region9: #{tpu_custom_call.1} parent=1 // pred_fallthru
      _
    // Predicated region
    $region10: #{tpu_custom_call.1} parent=1 // pred_check
      _
    $region11: #{tpu_custom_call.1} parent=1 // pred_check_branch
      %38 = sbr.rel (0) target = $region13
    $region12: #{tpu_custom_call.1} parent=1 // pred_region
      %s40 = ssub.s32 2048, 2048
      %41 = vsyncadd [#allocation7], %s40
      %s42 = sshll.u32 [#allocation8], 4
      %s43 = int_to_ptr.vmem [resolvable:$true] %s42
      %48 = dma.hbm_to_vmem [thread:$0]  %s2, 2048, %s43, [#allocation7], 128, 128, 8
    $region13: #{tpu_custom_call.1} parent=1 // pred_fallthru
      _
    // Predicated region
    $region14: #{tpu_custom_call.1} parent=1 // pred_check
      _
    $region15: #{tpu_custom_call.1} parent=1 // pred_check_branch
      %50 = sbr.rel (0) target = $region17
    $region16: #{tpu_custom_call.1} parent=1 // pred_region
      _
    $region17: #{tpu_custom_call.1} parent=1 // pred_fallthru
      _
    // Predicated region
    $region18: #{tpu_custom_call.1} parent=1 // pred_check
      _
    $region19: #{tpu_custom_call.1} parent=1 // pred_check_branch
      %52 = sbr.rel (0) target = $region21
    $region20: #{tpu_custom_call.1} parent=1 // pred_region
      %s54 = ssub.s32 2048, 2048
      %55 = vsyncadd [#allocation10], %s54
      %s56 = sshll.u32 [#allocation9], 4
      %s57 = int_to_ptr.vmem [resolvable:$true] %s56
      %62 = dma.hbm_to_vmem [thread:$0]  %s4, 2048, %s57, [#allocation10], 128, 128, 8
    $region21: #{tpu_custom_call.1} parent=1 // pred_fallthru
      _
    // Predicated region
    $region22: #{tpu_custom_call.1} parent=1 // pred_check
      _
    $region23: #{tpu_custom_call.1} parent=1 // pred_check_branch
      %64 = sbr.rel (0) target = $region25
    $region24: #{tpu_custom_call.1} parent=1 // pred_region
      _
    $region25: #{tpu_custom_call.1} parent=1 // pred_fallthru
      _
    // Predicated region
    $region26: #{tpu_custom_call.1} parent=1 // pred_check
      _
    $region27: #{tpu_custom_call.1} parent=1 // pred_check_branch
      %66 = sbr.rel (0) target = $region29
    $region28: #{tpu_custom_call.1} parent=1 // pred_region
      %67 = dma.done [#allocation4], 128
    $region29: #{tpu_custom_call.1} parent=1 // pred_fallthru
      _
    // Predicated region
    $region30: #{tpu_custom_call.1} parent=1 // pred_check
      _
    $region31: #{tpu_custom_call.1} parent=1 // pred_check_branch
      %69 = sbr.rel (0) target = $region33
    $region32: #{tpu_custom_call.1} parent=1 // pred_region
      %70 = dma.done [#allocation7], 512
    $region33: #{tpu_custom_call.1} parent=1 // pred_fallthru
      _
    // Predicated region
    $region34: #{tpu_custom_call.1} parent=1 // pred_check
      _
    $region35: #{tpu_custom_call.1} parent=1 // pred_check_branch
      %72 = sbr.rel (0) target = $region37
    $region36: #{tpu_custom_call.1} parent=1 // pred_region
      %73 = dma.done [#allocation7], 2048
    $region37: #{tpu_custom_call.1} parent=1 // pred_fallthru
      _
    // Predicated region
    $region38: #{tpu_custom_call.1} parent=1 // pred_check
      _
    $region39: #{tpu_custom_call.1} parent=1 // pred_check_branch
      %75 = sbr.rel (0) target = $region41
    $region40: #{tpu_custom_call.1} parent=1 // pred_region
      %76 = dma.done [#allocation10], 2048
    $region41: #{tpu_custom_call.1} parent=1 // pred_fallthru
      _
    %p77 = scmp.eq.s32.totalorder 0, 0
    // Predicated region
    $region42: #{tpu_custom_call.1} parent=1 // pred_check
      %p78 = pneg %p77
    $region43: #{tpu_custom_call.1} parent=1 // pred_check_branch
      %80 = sbr.rel (%p78) target = $region45
    $region44: #{tpu_custom_call.1} parent=1 // pred_region
      %81 = vst [vmem:[#allocation2] sm:$0xff] 0.0
    $region45: #{tpu_custom_call.1} parent=1 // pred_fallthru
      _
    %v82 = vlaneseq
    %v83 = vand.u32 %v82, 127
    %v84 = vld [vmem:[#allocation3] sm:$0xff]
    %s85 = smul.u32 0, 32
    %v86 = vstv %s85
    %v87 = vsub.s32 %v84, %v86
    %88 = vset.pattern.permute.xlu0 0
    %89 = vperm.xlu0 %88, %v87
    %v90 = vpop.permute.xlu0 %89
    %vm91 = vcmp.eq.s32.totalorder %v90, %v83
    %v92 = vsel %vm91, 1, 0
    %v93 = vcvt.s32.f32 %v92
    %v94 = vadd.f32 %v93, 0.0
    %95 = vset.pattern.permute.xlu0 1
    %96 = vperm.xlu0 %95, %v87
    %v97 = vpop.permute.xlu0 %96
    %vm98 = vcmp.eq.s32.totalorder %v97, %v83
    %v99 = vsel %vm98, 1, 0
    %v100 = vcvt.s32.f32 %v99
    %v101 = vadd.f32 %v94, %v100
    %102 = vset.pattern.permute.xlu0 2
    %103 = vperm.xlu0 %102, %v87
    %v104 = vpop.permute.xlu0 %103
    %vm105 = vcmp.eq.s32.totalorder %v104, %v83
    %v106 = vsel %vm105, 1, 0
    %v107 = vcvt.s32.f32 %v106
    %v108 = vadd.f32 %v101, %v107
    %109 = vset.pattern.permute.xlu0 3
    %110 = vperm.xlu0 %109, %v87
    %v111 = vpop.permute.xlu0 %110
    %vm112 = vcmp.eq.s32.totalorder %v111, %v83
    %v113 = vsel %vm112, 1, 0
    %v114 = vcvt.s32.f32 %v113
    %v115 = vadd.f32 %v108, %v114
    %116 = vset.pattern.permute.xlu0 4
    %117 = vperm.xlu0 %116, %v87
    %v118 = vpop.permute.xlu0 %117
    %vm119 = vcmp.eq.s32.totalorder %v118, %v83
    %v120 = vsel %vm119, 1, 0
    %v121 = vcvt.s32.f32 %v120
    %v122 = vadd.f32 %v115, %v121
    %123 = vset.pattern.permute.xlu0 5
    %124 = vperm.xlu0 %123, %v87
    %v125 = vpop.permute.xlu0 %124
    %vm126 = vcmp.eq.s32.totalorder %v125, %v83
    %v127 = vsel %vm126, 1, 0
    %v128 = vcvt.s32.f32 %v127
    %v129 = vadd.f32 %v122, %v128
    %130 = vset.pattern.permute.xlu0 6
    %131 = vperm.xlu0 %130, %v87
    %v132 = vpop.permute.xlu0 %131
    %vm133 = vcmp.eq.s32.totalorder %v132, %v83
    %v134 = vsel %vm133, 1, 0
    %v135 = vcvt.s32.f32 %v134
    %v136 = vadd.f32 %v129, %v135
    %137 = vset.pattern.permute.xlu0 7
    %138 = vperm.xlu0 %137, %v87
    %v139 = vpop.permute.xlu0 %138
    %vm140 = vcmp.eq.s32.totalorder %v139, %v83
    %v141 = vsel %vm140, 1, 0
    %v142 = vcvt.s32.f32 %v141
    %v143 = vadd.f32 %v136, %v142
    %v144 = vld [vmem:[#allocation2] sm:$0xff]
    %v145 = vld [vmem:[#allocation6] sm:$0xff]
    %v146 = vld [vmem:[#allocation6 + $0x8] sm:$0xff]
    %v147 = vld [vmem:[#allocation6 + $0x10] sm:$0xff]
    %v148 = vld [vmem:[#allocation6 + $0x18] sm:$0xff]
    %vm149 = vcmask 261120
    %v151 = vsel %vm149, %v143, 0
    %153 = vmatprep.subr.mxu0 0.0
    %154 = vmatpush1.msra.mxu0 0.0
    %155 = vmatprep.subr.mxu0 0.0
    %156 = vmatpush1.msra.mxu0 0.0
    %157 = vmatprep.subr.mxu0 0.0
    %158 = vmatpush1.msra.mxu0 0.0
    %159 = vmatprep.subr.mxu0 0.0
    %160 = vmatpush1.msra.mxu0 0.0
    %161 = vmatprep.subr.mxu0 0.0
    %162 = vmatpush1.msra.mxu0 0.0
    %163 = vmatprep.subr.mxu0 0.0
    %164 = vmatpush1.msra.mxu0 0.0
    %165 = vmatprep.subr.mxu0 0.0
    %166 = vmatpush1.msra.mxu0 0.0
    %167 = vmatprep.subr.mxu0 0.0
    %168 = vmatpush1.msra.mxu0 0.0
    %169 = vmatprep.subr.mxu0 0.0
    %170 = vmatpush1.msra.mxu0 0.0
    %171 = vmatprep.subr.mxu0 0.0
    %172 = vmatpush1.msra.mxu0 0.0
    %173 = vmatprep.subr.mxu0 0.0
    %174 = vmatpush1.msra.mxu0 0.0
    %175 = vmatprep.subr.mxu0 0.0
    %176 = vmatpush1.msra.mxu0 0.0
    %177 = vmatprep.subr.mxu0 0.0
    %178 = vmatpush1.msra.mxu0 %v148
    %179 = vmatprep.subr.mxu0 0.0
    %180 = vmatpush1.msra.mxu0 %v147
    %181 = vmatprep.subr.mxu0 0.0
    %182 = vmatpush1.msra.mxu0 %v146
    %183 = vmatprep.subr.mxu0 0.0
    %184 = vmatpush1.msra.mxu0 %v145
    %185 = vmatprep.subr.mxu0 0.0
    %186 = vmatpush2.msra.mxu0 0.0
    %187 = vmatprep.subr.mxu0 0.0
    %188 = vmatpush2.msra.mxu0 0.0
    %189 = vmatprep.subr.mxu0 0.0
    %190 = vmatpush2.msra.mxu0 0.0
    %191 = vmatprep.subr.mxu0 0.0
    %192 = vmatpush2.msra.mxu0 0.0
    %193 = vmatprep.subr.mxu0 0.0
    %194 = vmatpush2.msra.mxu0 0.0
    %195 = vmatprep.subr.mxu0 0.0
    %196 = vmatpush2.msra.mxu0 0.0
    %197 = vmatprep.subr.mxu0 0.0
    %198 = vmatpush2.msra.mxu0 0.0
    %199 = vmatprep.subr.mxu0 0.0
    %200 = vmatpush2.msra.mxu0 0.0
    %201 = vmatprep.subr.mxu0 0.0
    %202 = vmatpush2.msra.mxu0 0.0
    %203 = vmatprep.subr.mxu0 0.0
    %204 = vmatpush2.msra.mxu0 0.0
    %205 = vmatprep.subr.mxu0 0.0
    %206 = vmatpush2.msra.mxu0 0.0
    %207 = vmatprep.subr.mxu0 0.0
    %208 = vmatpush2.msra.mxu0 0.0
    %209 = vmatprep.subr.mxu0 0.0
    %210 = vmatpush2.msra.mxu0 0.0
    %211 = vmatprep.subr.mxu0 0.0
    %212 = vmatpush2.msra.mxu0 0.0
    %213 = vmatprep.subr.mxu0 0.0
    %214 = vmatpush2.msra.mxu0 0.0
    %215 = vmatprep.subr.mxu0 0.0
    %216 = vmatpush2.msra.mxu0 0.0
    %217 = vmatprep.mubr.f32.mxu0 0.0
    %218 = vmatmul.mubr.f32.gmra.mxu0 %v151
    %v219 = vpop.f32.mrf.mxu0
    %v220 = vadd.f32 0.0, %v219
    %v221 = vpop.f32.mrf.mxu0
    %222 = vdwg.mxu0
    %v223 = vadd.f32 %v144, %v220
    %224 = vst [vmem:[#allocation2] sm:$0xff] %v223
    // Predicated region
    $region46: #{tpu_custom_call.1} parent=1 // pred_check
      %p225 = pneg %p77
    $region47: #{tpu_custom_call.1} parent=1 // pred_check_branch
      %227 = sbr.rel (%p225) target = $region49
    $region48: #{tpu_custom_call.1} parent=1 // pred_region
      %v228 = vld [vmem:[#allocation2] sm:$0xff]
      %v229 = vmul.f32 %v228, 0.125
      %v230 = vld [vmem:[#allocation8] sm:$0xff]
      %v231 = vld [vmem:[#allocation8 + $0x8] sm:$0xff]
      %v232 = vld [vmem:[#allocation8 + $0x10] sm:$0xff]
      %v233 = vld [vmem:[#allocation8 + $0x18] sm:$0xff]
      %v234 = vld [vmem:[#allocation8 + $0x20] sm:$0xff]
      %v235 = vld [vmem:[#allocation8 + $0x28] sm:$0xff]
      %v236 = vld [vmem:[#allocation8 + $0x30] sm:$0xff]
      %v237 = vld [vmem:[#allocation8 + $0x38] sm:$0xff]
      %v238 = vld [vmem:[#allocation8 + $0x40] sm:$0xff]
      %v239 = vld [vmem:[#allocation8 + $0x48] sm:$0xff]
      %v240 = vld [vmem:[#allocation8 + $0x50] sm:$0xff]
      %v241 = vld [vmem:[#allocation8 + $0x58] sm:$0xff]
      %v242 = vld [vmem:[#allocation8 + $0x60] sm:$0xff]
      %v243 = vld [vmem:[#allocation8 + $0x68] sm:$0xff]
      %v244 = vld [vmem:[#allocation8 + $0x70] sm:$0xff]
      %v245 = vld [vmem:[#allocation8 + $0x78] sm:$0xff]
      %v246 = vld [vmem:[%s3] sm:$0x1]
      %v248 = vlaneseq
      %v249 = vshrl.u32 %v248, 7
      %v250 = vsub.s32 0, %v249
      %v251 = vrot.slane %v246, %v250
      %253 = vmatprep.subr.mxu0 0.0
      %254 = vmatpush1.msra.mxu0 %v245
      %255 = vmatprep.subr.mxu0 0.0
      %256 = vmatpush1.msra.mxu0 %v244
      %257 = vmatprep.subr.mxu0 0.0
      %258 = vmatpush1.msra.mxu0 %v243
      %259 = vmatprep.subr.mxu0 0.0
      %260 = vmatpush1.msra.mxu0 %v242
      %261 = vmatprep.subr.mxu0 0.0
      %262 = vmatpush1.msra.mxu0 %v241
      %263 = vmatprep.subr.mxu0 0.0
      %264 = vmatpush1.msra.mxu0 %v240
      %265 = vmatprep.subr.mxu0 0.0
      %266 = vmatpush1.msra.mxu0 %v239
      %267 = vmatprep.subr.mxu0 0.0
      %268 = vmatpush1.msra.mxu0 %v238
      %269 = vmatprep.subr.mxu0 0.0
      %270 = vmatpush1.msra.mxu0 %v237
      %271 = vmatprep.subr.mxu0 0.0
      %272 = vmatpush1.msra.mxu0 %v236
      %273 = vmatprep.subr.mxu0 0.0
      %274 = vmatpush1.msra.mxu0 %v235
      %275 = vmatprep.subr.mxu0 0.0
      %276 = vmatpush1.msra.mxu0 %v234
      %277 = vmatprep.subr.mxu0 0.0
      %278 = vmatpush1.msra.mxu0 %v233
      %279 = vmatprep.subr.mxu0 0.0
      %280 = vmatpush1.msra.mxu0 %v232
      %281 = vmatprep.subr.mxu0 0.0
      %282 = vmatpush1.msra.mxu0 %v231
      %283 = vmatprep.subr.mxu0 0.0
      %284 = vmatpush1.msra.mxu0 %v230
      %285 = vmatprep.subr.mxu0 0.0
      %286 = vmatpush2.msra.mxu0 0.0
      %287 = vmatprep.subr.mxu0 0.0
      %288 = vmatpush2.msra.mxu0 0.0
      %289 = vmatprep.subr.mxu0 0.0
      %290 = vmatpush2.msra.mxu0 0.0
      %291 = vmatprep.subr.mxu0 0.0
      %292 = vmatpush2.msra.mxu0 0.0
      %293 = vmatprep.subr.mxu0 0.0
      %294 = vmatpush2.msra.mxu0 0.0
      %295 = vmatprep.subr.mxu0 0.0
      %296 = vmatpush2.msra.mxu0 0.0
      %297 = vmatprep.subr.mxu0 0.0
      %298 = vmatpush2.msra.mxu0 0.0
      %299 = vmatprep.subr.mxu0 0.0
      %300 = vmatpush2.msra.mxu0 0.0
      %301 = vmatprep.subr.mxu0 0.0
      %302 = vmatpush2.msra.mxu0 0.0
      %303 = vmatprep.subr.mxu0 0.0
      %304 = vmatpush2.msra.mxu0 0.0
      %305 = vmatprep.subr.mxu0 0.0
      %306 = vmatpush2.msra.mxu0 0.0
      %307 = vmatprep.subr.mxu0 0.0
      %308 = vmatpush2.msra.mxu0 0.0
      %309 = vmatprep.subr.mxu0 0.0
      %310 = vmatpush2.msra.mxu0 0.0
      %311 = vmatprep.subr.mxu0 0.0
      %312 = vmatpush2.msra.mxu0 0.0
      %313 = vmatprep.subr.mxu0 0.0
      %314 = vmatpush2.msra.mxu0 0.0
      %315 = vmatprep.subr.mxu0 0.0
      %316 = vmatpush2.msra.mxu0 0.0
      %317 = vmatprep.mubr.f32.mxu0 0.0
      %318 = vmatmul.mubr.f32.gmra.mxu0 %v229
      %v319 = vpop.f32.mrf.mxu0
      %v320 = vadd.f32 %v251, %v319
      %v321 = vpop.f32.mrf.mxu0
      %322 = vdwg.mxu0
      %v323 = vmax.f32 %v320, 0.0
      %v324 = vld [vmem:[#allocation9] sm:$0xff]
      %v325 = vld [vmem:[#allocation9 + $0x8] sm:$0xff]
      %v326 = vld [vmem:[#allocation9 + $0x10] sm:$0xff]
      %v327 = vld [vmem:[#allocation9 + $0x18] sm:$0xff]
      %v328 = vld [vmem:[#allocation9 + $0x20] sm:$0xff]
      %v329 = vld [vmem:[#allocation9 + $0x28] sm:$0xff]
      %v330 = vld [vmem:[#allocation9 + $0x30] sm:$0xff]
      %v331 = vld [vmem:[#allocation9 + $0x38] sm:$0xff]
      %v332 = vld [vmem:[#allocation9 + $0x40] sm:$0xff]
      %v333 = vld [vmem:[#allocation9 + $0x48] sm:$0xff]
      %v334 = vld [vmem:[#allocation9 + $0x50] sm:$0xff]
      %v335 = vld [vmem:[#allocation9 + $0x58] sm:$0xff]
      %v336 = vld [vmem:[#allocation9 + $0x60] sm:$0xff]
      %v337 = vld [vmem:[#allocation9 + $0x68] sm:$0xff]
      %v338 = vld [vmem:[#allocation9 + $0x70] sm:$0xff]
      %v339 = vld [vmem:[#allocation9 + $0x78] sm:$0xff]
      %v340 = vld [vmem:[%s5] sm:$0x1]
      %v342 = vlaneseq
      %v343 = vshrl.u32 %v342, 7
      %v344 = vsub.s32 0, %v343
      %v345 = vrot.slane %v340, %v344
      %347 = vmatprep.subr.mxu0 0.0
      %348 = vmatpush1.msra.mxu0 %v339
      %349 = vmatprep.subr.mxu0 0.0
      %350 = vmatpush1.msra.mxu0 %v338
      %351 = vmatprep.subr.mxu0 0.0
      %352 = vmatpush1.msra.mxu0 %v337
      %353 = vmatprep.subr.mxu0 0.0
      %354 = vmatpush1.msra.mxu0 %v336
      %355 = vmatprep.subr.mxu0 0.0
      %356 = vmatpush1.msra.mxu0 %v335
      %357 = vmatprep.subr.mxu0 0.0
      %358 = vmatpush1.msra.mxu0 %v334
      %359 = vmatprep.subr.mxu0 0.0
      %360 = vmatpush1.msra.mxu0 %v333
      %361 = vmatprep.subr.mxu0 0.0
      %362 = vmatpush1.msra.mxu0 %v332
      %363 = vmatprep.subr.mxu0 0.0
      %364 = vmatpush1.msra.mxu0 %v331
      %365 = vmatprep.subr.mxu0 0.0
      %366 = vmatpush1.msra.mxu0 %v330
      %367 = vmatprep.subr.mxu0 0.0
      %368 = vmatpush1.msra.mxu0 %v329
      %369 = vmatprep.subr.mxu0 0.0
      %370 = vmatpush1.msra.mxu0 %v328
      %371 = vmatprep.subr.mxu0 0.0
      %372 = vmatpush1.msra.mxu0 %v327
      %373 = vmatprep.subr.mxu0 0.0
      %374 = vmatpush1.msra.mxu0 %v326
      %375 = vmatprep.subr.mxu0 0.0
      %376 = vmatpush1.msra.mxu0 %v325
      %377 = vmatprep.subr.mxu0 0.0
      %378 = vmatpush1.msra.mxu0 %v324
      %379 = vmatprep.subr.mxu0 0.0
      %380 = vmatpush2.msra.mxu0 0.0
      %381 = vmatprep.subr.mxu0 0.0
      %382 = vmatpush2.msra.mxu0 0.0
      %383 = vmatprep.subr.mxu0 0.0
      %384 = vmatpush2.msra.mxu0 0.0
      %385 = vmatprep.subr.mxu0 0.0
      %386 = vmatpush2.msra.mxu0 0.0
      %387 = vmatprep.subr.mxu0 0.0
      %388 = vmatpush2.msra.mxu0 0.0
      %389 = vmatprep.subr.mxu0 0.0
      %390 = vmatpush2.msra.mxu0 0.0
      %391 = vmatprep.subr.mxu0 0.0
      %392 = vmatpush2.msra.mxu0 0.0
      %393 = vmatprep.subr.mxu0 0.0
      %394 = vmatpush2.msra.mxu0 0.0
      %395 = vmatprep.subr.mxu0 0.0
      %396 = vmatpush2.msra.mxu0 0.0
      %397 = vmatprep.subr.mxu0 0.0
      %398 = vmatpush2.msra.mxu0 0.0
      %399 = vmatprep.subr.mxu0 0.0
      %400 = vmatpush2.msra.mxu0 0.0
      %401 = vmatprep.subr.mxu0 0.0
      %402 = vmatpush2.msra.mxu0 0.0
      %403 = vmatprep.subr.mxu0 0.0
      %404 = vmatpush2.msra.mxu0 0.0
      %405 = vmatprep.subr.mxu0 0.0
      %406 = vmatpush2.msra.mxu0 0.0
      %407 = vmatprep.subr.mxu0 0.0
      %408 = vmatpush2.msra.mxu0 0.0
      %409 = vmatprep.subr.mxu0 0.0
      %410 = vmatpush2.msra.mxu0 0.0
      %411 = vmatprep.mubr.f32.mxu0 0.0
      %412 = vmatmul.mubr.f32.gmra.mxu0 %v323
      %v413 = vpop.f32.mrf.mxu0
      %v414 = vadd.f32 %v345, %v413
      %v415 = vpop.f32.mrf.mxu0
      %416 = vdwg.mxu0
      %417 = vst [vmem:[#allocation11] sm:$0xff] %v414
    $region49: #{tpu_custom_call.1} parent=1 // pred_fallthru
      _
    // Predicated region
    $region50: #{tpu_custom_call.1} parent=1 // pred_check
      _
    $region51: #{tpu_custom_call.1} parent=1 // pred_check_branch
      %419 = sbr.rel (0) target = $region53
    $region52: #{tpu_custom_call.1} parent=1 // pred_region
      %s421 = ssub.s32 128, 128
      %422 = vsyncadd [#allocation5], %s421
      %s424 = sshll.u32 [#allocation11], 4
      %s425 = int_to_ptr.vmem [resolvable:$true] %s424
      %427 = dma.vmem_to_hbm [thread:$0]  %s425, 128, %s6, [#allocation5]
    $region53: #{tpu_custom_call.1} parent=1 // pred_fallthru
      _
    // Predicated region
    $region54: #{tpu_custom_call.1} parent=1 // pred_check
      _
    $region55: #{tpu_custom_call.1} parent=1 // pred_check_branch
      %429 = sbr.rel (0) target = $region57
    $region56: #{tpu_custom_call.1} parent=1 // pred_region
      %430 = dma.done [#allocation5], 128
    $region57: #{tpu_custom_call.1} parent=1 // pred_fallthru
      _
    %431 = vsyncpa [#allocation4], 1
    %432 = vsyncpa [#allocation7], 1
    %433 = vsyncpa [#allocation10], 1
    %434 = vsyncpa [#allocation5], 1

// kernel: tpu_custom_call.1
$region0: #{tpu_custom_call.1}
  #allocation0 [shape = 'u32[]', space=smem, size = 0x4, offset = 0x4, fixed_abs, tag = 'smem constant byte address 0x4 - core index']
  #allocation1 [shape = 'u32[144,128]{1,0:T(1,128)}', space=vmem, size = 0x12000, scoped, tag = 'internal scratch']
  #allocation2 [shape = 'f32[8,128]{1,0:T(8,128)}', space=vmem, size = 0x1000, scoped, tag = 'scratch operand']
  %s0 = inlined_call_operand.hbm [shape: s32[8,8], index: 0, kind: input, shape index: {}]
  %s1 = inlined_call_operand.hbm [shape: f32[32,128], index: 1, kind: input, shape index: {}]
  %s2 = inlined_call_operand.hbm [shape: f32[128,128], index: 2, kind: input, shape index: {}]
  %s3 = inlined_call_operand.vmem [shape: f32[1,128], index: 3, kind: input, shape index: {}]
  %s4 = inlined_call_operand.hbm [shape: f32[128,128], index: 4, kind: input, shape index: {}]
  %s5 = inlined_call_operand.vmem [shape: f32[1,128], index: 5, kind: input, shape index: {}]
  %s6 = inlined_call_operand.hbm [shape: f32[8,128], index: 6, kind: output, shape index: {}]
  %s7 = sld [smem:[#allocation0]]
  $region58: #{tpu_custom_call.1} parent=0
    _
  %s9 = ssub.s32 1, %s7
  %s10 = scalar_select 0, %s9, %s7
  $region1: #{tpu_custom_call.1} parent=0
    #allocation3 [shape = 'u8[4096]{0}', space=vmem, size = 0x1000, scoped, tag = 'input window, operand 0, single buffered']
    #allocation4 [shape = 's32[1]{0}', space=sflag, size = 0x4, scoped, tag = 'scoped memory for tpu_custom_call.1']
    #allocation5 [shape = 's32[1]{0}', space=sflag, size = 0x4, scoped, tag = 'scoped memory for tpu_custom_call.1']
    #allocation6 [shape = 'u8[16384]{0}', space=vmem, size = 0x4000, scoped, tag = 'input window, operand 1, single buffered']
    #allocation7 [shape = 's32[1]{0}', space=sflag, size = 0x4, scoped, tag = 'scoped memory for tpu_custom_call.1']
    #allocation8 [shape = 'u8[65536]{0}', space=vmem, size = 0x10000, scoped, tag = 'input window, operand 2, single buffered']
    #allocation9 [shape = 'u8[65536]{0}', space=vmem, size = 0x10000, scoped, tag = 'input window, operand 4, single buffered']
    #allocation10 [shape = 's32[1]{0}', space=sflag, size = 0x4, scoped, tag = 'scoped memory for tpu_custom_call.1']
    #allocation11 [shape = 'u8[4096]{0}', space=vmem, size = 0x1000, scoped, tag = 'output window, operand 0, single buffered']
    %11 = vsyncpa [#allocation4], 0
    %12 = vsyncpa [#allocation7], 0
    %13 = vsyncpa [#allocation10], 0
    %14 = vsyncpa [#allocation5], 0
    // Predicated region
    $region2: #{tpu_custom_call.1} parent=1 // pred_check
      _
    $region3: #{tpu_custom_call.1} parent=1 // pred_check_branch
      %16 = sbr.rel (0) target = $region5
    $region4: #{tpu_custom_call.1} parent=1 // pred_region
      %s18 = ssub.s32 128, 128
      %19 = vsyncadd [#allocation4], %s18
      %s21 = sshll.u32 [#allocation3], 4
      %s22 = int_to_ptr.vmem [resolvable:$true] %s21
      %24 = dma.hbm_to_vmem [thread:$0]  %s0, 128, %s22, [#allocation4]
    $region5: #{tpu_custom_call.1} parent=1 // pred_fallthru
      _
    // Predicated region
    $region6: #{tpu_custom_call.1} parent=1 // pred_check
      _
    $region7: #{tpu_custom_call.1} parent=1 // pred_check_branch
      %26 = sbr.rel (0) target = $region9
    $region8: #{tpu_custom_call.1} parent=1 // pred_region
      %s28 = ssub.s32 512, 512
      %29 = vsyncadd [#allocation7], %s28
      %s30 = sshll.u32 [#allocation6], 4
      %s31 = int_to_ptr.vmem [resolvable:$true] %s30
      %36 = dma.hbm_to_vmem [thread:$0]  %s1, 512, %s31, [#allocation7], 128, 128, 8
    $region9: #{tpu_custom_call.1} parent=1 // pred_fallthru
      _
    // Predicated region
    $region10: #{tpu_custom_call.1} parent=1 // pred_check
      _
    $region11: #{tpu_custom_call.1} parent=1 // pred_check_branch
      %38 = sbr.rel (0) target = $region13
    $region12: #{tpu_custom_call.1} parent=1 // pred_region
      %s40 = ssub.s32 2048, 2048
      %41 = vsyncadd [#allocation7], %s40
      %s42 = sshll.u32 [#allocation8], 4
      %s43 = int_to_ptr.vmem [resolvable:$true] %s42
      %48 = dma.hbm_to_vmem [thread:$0]  %s2, 2048, %s43, [#allocation7], 128, 128, 8
    $region13: #{tpu_custom_call.1} parent=1 // pred_fallthru
      _
    // Predicated region
    $region14: #{tpu_custom_call.1} parent=1 // pred_check
      _
    $region15: #{tpu_custom_call.1} parent=1 // pred_check_branch
      %50 = sbr.rel (0) target = $region17
    $region16: #{tpu_custom_call.1} parent=1 // pred_region
      _
    $region17: #{tpu_custom_call.1} parent=1 // pred_fallthru
      _
    // Predicated region
    $region18: #{tpu_custom_call.1} parent=1 // pred_check
      _
    $region19: #{tpu_custom_call.1} parent=1 // pred_check_branch
      %52 = sbr.rel (0) target = $region21
    $region20: #{tpu_custom_call.1} parent=1 // pred_region
      %s54 = ssub.s32 2048, 2048
      %55 = vsyncadd [#allocation10], %s54
      %s56 = sshll.u32 [#allocation9], 4
      %s57 = int_to_ptr.vmem [resolvable:$true] %s56
      %62 = dma.hbm_to_vmem [thread:$0]  %s4, 2048, %s57, [#allocation10], 128, 128, 8
    $region21: #{tpu_custom_call.1} parent=1 // pred_fallthru
      _
    // Predicated region
    $region22: #{tpu_custom_call.1} parent=1 // pred_check
      _
    $region23: #{tpu_custom_call.1} parent=1 // pred_check_branch
      %64 = sbr.rel (0) target = $region25
    $region24: #{tpu_custom_call.1} parent=1 // pred_region
      _
    $region25: #{tpu_custom_call.1} parent=1 // pred_fallthru
      _
    // Predicated region
    $region26: #{tpu_custom_call.1} parent=1 // pred_check
      _
    $region27: #{tpu_custom_call.1} parent=1 // pred_check_branch
      %66 = sbr.rel (0) target = $region29
    $region28: #{tpu_custom_call.1} parent=1 // pred_region
      %67 = dma.done [#allocation4], 128
    $region29: #{tpu_custom_call.1} parent=1 // pred_fallthru
      _
    // Predicated region
    $region30: #{tpu_custom_call.1} parent=1 // pred_check
      _
    $region31: #{tpu_custom_call.1} parent=1 // pred_check_branch
      %69 = sbr.rel (0) target = $region33
    $region32: #{tpu_custom_call.1} parent=1 // pred_region
      %70 = dma.done [#allocation7], 512
    $region33: #{tpu_custom_call.1} parent=1 // pred_fallthru
      _
    // Predicated region
    $region34: #{tpu_custom_call.1} parent=1 // pred_check
      _
    $region35: #{tpu_custom_call.1} parent=1 // pred_check_branch
      %72 = sbr.rel (0) target = $region37
    $region36: #{tpu_custom_call.1} parent=1 // pred_region
      %73 = dma.done [#allocation7], 2048
    $region37: #{tpu_custom_call.1} parent=1 // pred_fallthru
      _
    // Predicated region
    $region38: #{tpu_custom_call.1} parent=1 // pred_check
      _
    $region39: #{tpu_custom_call.1} parent=1 // pred_check_branch
      %75 = sbr.rel (0) target = $region41
    $region40: #{tpu_custom_call.1} parent=1 // pred_region
      %76 = dma.done [#allocation10], 2048
    $region41: #{tpu_custom_call.1} parent=1 // pred_fallthru
      _
    %p77 = scmp.eq.s32.totalorder 0, 0
    // Predicated region
    $region42: #{tpu_custom_call.1} parent=1 // pred_check
      %p78 = pneg %p77
    $region43: #{tpu_custom_call.1} parent=1 // pred_check_branch
      %80 = sbr.rel (%p78) target = $region45
    $region44: #{tpu_custom_call.1} parent=1 // pred_region
      %81 = vst [vmem:[#allocation2] sm:$0xff] 0.0
    $region45: #{tpu_custom_call.1} parent=1 // pred_fallthru
      _
    %v82 = vlaneseq
    %v83 = vand.u32 %v82, 127
    %v84 = vld [vmem:[#allocation3] sm:$0xff]
    %s85 = smul.u32 0, 32
    %v86 = vstv %s85
    %v87 = vsub.s32 %v84, %v86
    %88 = vset.pattern.permute.xlu0 0
    %89 = vperm.xlu0 %88, %v87
    %v90 = vpop.permute.xlu0 %89
    %vm91 = vcmp.eq.s32.totalorder %v90, %v83
    %v92 = vsel %vm91, 1, 0
    %v93 = vcvt.s32.f32 %v92
    %v94 = vadd.f32 %v93, 0.0
    %95 = vset.pattern.permute.xlu0 1
    %96 = vperm.xlu0 %95, %v87
    %v97 = vpop.permute.xlu0 %96
    %vm98 = vcmp.eq.s32.totalorder %v97, %v83
    %v99 = vsel %vm98, 1, 0
    %v100 = vcvt.s32.f32 %v99
    %v101 = vadd.f32 %v94, %v100
    %102 = vset.pattern.permute.xlu0 2
    %103 = vperm.xlu0 %102, %v87
    %v104 = vpop.permute.xlu0 %103
    %vm105 = vcmp.eq.s32.totalorder %v104, %v83
    %v106 = vsel %vm105, 1, 0
    %v107 = vcvt.s32.f32 %v106
    %v108 = vadd.f32 %v101, %v107
    %109 = vset.pattern.permute.xlu0 3
    %110 = vperm.xlu0 %109, %v87
    %v111 = vpop.permute.xlu0 %110
    %vm112 = vcmp.eq.s32.totalorder %v111, %v83
    %v113 = vsel %vm112, 1, 0
    %v114 = vcvt.s32.f32 %v113
    %v115 = vadd.f32 %v108, %v114
    %116 = vset.pattern.permute.xlu0 4
    %117 = vperm.xlu0 %116, %v87
    %v118 = vpop.permute.xlu0 %117
    %vm119 = vcmp.eq.s32.totalorder %v118, %v83
    %v120 = vsel %vm119, 1, 0
    %v121 = vcvt.s32.f32 %v120
    %v122 = vadd.f32 %v115, %v121
    %123 = vset.pattern.permute.xlu0 5
    %124 = vperm.xlu0 %123, %v87
    %v125 = vpop.permute.xlu0 %124
    %vm126 = vcmp.eq.s32.totalorder %v125, %v83
    %v127 = vsel %vm126, 1, 0
    %v128 = vcvt.s32.f32 %v127
    %v129 = vadd.f32 %v122, %v128
    %130 = vset.pattern.permute.xlu0 6
    %131 = vperm.xlu0 %130, %v87
    %v132 = vpop.permute.xlu0 %131
    %vm133 = vcmp.eq.s32.totalorder %v132, %v83
    %v134 = vsel %vm133, 1, 0
    %v135 = vcvt.s32.f32 %v134
    %v136 = vadd.f32 %v129, %v135
    %137 = vset.pattern.permute.xlu0 7
    %138 = vperm.xlu0 %137, %v87
    %v139 = vpop.permute.xlu0 %138
    %vm140 = vcmp.eq.s32.totalorder %v139, %v83
    %v141 = vsel %vm140, 1, 0
    %v142 = vcvt.s32.f32 %v141
    %v143 = vadd.f32 %v136, %v142
    %v144 = vld [vmem:[#allocation2] sm:$0xff]
    %v145 = vld [vmem:[#allocation6] sm:$0xff]
    %v146 = vld [vmem:[#allocation6 + $0x8] sm:$0xff]
    %v147 = vld [vmem:[#allocation6 + $0x10] sm:$0xff]
    %v148 = vld [vmem:[#allocation6 + $0x18] sm:$0xff]
    %vm149 = vcmask 261120
    %v151 = vsel %vm149, %v143, 0
    %153 = vmatprep.subr.mxu0 0.0
    %154 = vmatpush1.msra.mxu0 0.0
    %155 = vmatprep.subr.mxu0 0.0
    %156 = vmatpush1.msra.mxu0 0.0
    %157 = vmatprep.subr.mxu0 0.0
    %158 = vmatpush1.msra.mxu0 0.0
    %159 = vmatprep.subr.mxu0 0.0
    %160 = vmatpush1.msra.mxu0 0.0
    %161 = vmatprep.subr.mxu0 0.0
    %162 = vmatpush1.msra.mxu0 0.0
    %163 = vmatprep.subr.mxu0 0.0
    %164 = vmatpush1.msra.mxu0 0.0
    %165 = vmatprep.subr.mxu0 0.0
    %166 = vmatpush1.msra.mxu0 0.0
    %167 = vmatprep.subr.mxu0 0.0
    %168 = vmatpush1.msra.mxu0 0.0
    %169 = vmatprep.subr.mxu0 0.0
    %170 = vmatpush1.msra.mxu0 0.0
    %171 = vmatprep.subr.mxu0 0.0
    %172 = vmatpush1.msra.mxu0 0.0
    %173 = vmatprep.subr.mxu0 0.0
    %174 = vmatpush1.msra.mxu0 0.0
    %175 = vmatprep.subr.mxu0 0.0
    %176 = vmatpush1.msra.mxu0 0.0
    %177 = vmatprep.subr.mxu0 0.0
    %178 = vmatpush1.msra.mxu0 %v148
    %179 = vmatprep.subr.mxu0 0.0
    %180 = vmatpush1.msra.mxu0 %v147
    %181 = vmatprep.subr.mxu0 0.0
    %182 = vmatpush1.msra.mxu0 %v146
    %183 = vmatprep.subr.mxu0 0.0
    %184 = vmatpush1.msra.mxu0 %v145
    %185 = vmatprep.subr.mxu0 0.0
    %186 = vmatpush2.msra.mxu0 0.0
    %187 = vmatprep.subr.mxu0 0.0
    %188 = vmatpush2.msra.mxu0 0.0
    %189 = vmatprep.subr.mxu0 0.0
    %190 = vmatpush2.msra.mxu0 0.0
    %191 = vmatprep.subr.mxu0 0.0
    %192 = vmatpush2.msra.mxu0 0.0
    %193 = vmatprep.subr.mxu0 0.0
    %194 = vmatpush2.msra.mxu0 0.0
    %195 = vmatprep.subr.mxu0 0.0
    %196 = vmatpush2.msra.mxu0 0.0
    %197 = vmatprep.subr.mxu0 0.0
    %198 = vmatpush2.msra.mxu0 0.0
    %199 = vmatprep.subr.mxu0 0.0
    %200 = vmatpush2.msra.mxu0 0.0
    %201 = vmatprep.subr.mxu0 0.0
    %202 = vmatpush2.msra.mxu0 0.0
    %203 = vmatprep.subr.mxu0 0.0
    %204 = vmatpush2.msra.mxu0 0.0
    %205 = vmatprep.subr.mxu0 0.0
    %206 = vmatpush2.msra.mxu0 0.0
    %207 = vmatprep.subr.mxu0 0.0
    %208 = vmatpush2.msra.mxu0 0.0
    %209 = vmatprep.subr.mxu0 0.0
    %210 = vmatpush2.msra.mxu0 0.0
    %211 = vmatprep.subr.mxu0 0.0
    %212 = vmatpush2.msra.mxu0 0.0
    %213 = vmatprep.subr.mxu0 0.0
    %214 = vmatpush2.msra.mxu0 0.0
    %215 = vmatprep.subr.mxu0 0.0
    %216 = vmatpush2.msra.mxu0 0.0
    %217 = vmatprep.mubr.f32.mxu0 0.0
    %218 = vmatmul.mubr.f32.gmra.mxu0 %v151
    %v219 = vpop.f32.mrf.mxu0
    %v220 = vadd.f32 0.0, %v219
    %v221 = vpop.f32.mrf.mxu0
    %222 = vdwg.mxu0
    %v223 = vadd.f32 %v144, %v220
    %224 = vst [vmem:[#allocation2] sm:$0xff] %v223
    // Predicated region
    $region46: #{tpu_custom_call.1} parent=1 // pred_check
      %p225 = pneg %p77
    $region47: #{tpu_custom_call.1} parent=1 // pred_check_branch
      %227 = sbr.rel (%p225) target = $region49
    $region48: #{tpu_custom_call.1} parent=1 // pred_region
      %v228 = vld [vmem:[#allocation2] sm:$0xff]
      %v229 = vmul.f32 %v228, 0.125
      %v230 = vld [vmem:[#allocation8] sm:$0xff]
      %v231 = vld [vmem:[#allocation8 + $0x8] sm:$0xff]
      %v232 = vld [vmem:[#allocation8 + $0x10] sm:$0xff]
      %v233 = vld [vmem:[#allocation8 + $0x18] sm:$0xff]
      %v234 = vld [vmem:[#allocation8 + $0x20] sm:$0xff]
      %v235 = vld [vmem:[#allocation8 + $0x28] sm:$0xff]
      %v236 = vld [vmem:[#allocation8 + $0x30] sm:$0xff]
      %v237 = vld [vmem:[#allocation8 + $0x38] sm:$0xff]
      %v238 = vld [vmem:[#allocation8 + $0x40] sm:$0xff]
      %v239 = vld [vmem:[#allocation8 + $0x48] sm:$0xff]
      %v240 = vld [vmem:[#allocation8 + $0x50] sm:$0xff]
      %v241 = vld [vmem:[#allocation8 + $0x58] sm:$0xff]
      %v242 = vld [vmem:[#allocation8 + $0x60] sm:$0xff]
      %v243 = vld [vmem:[#allocation8 + $0x68] sm:$0xff]
      %v244 = vld [vmem:[#allocation8 + $0x70] sm:$0xff]
      %v245 = vld [vmem:[#allocation8 + $0x78] sm:$0xff]
      %v246 = vld [vmem:[%s3] sm:$0x1]
      %v248 = vlaneseq
      %v249 = vshrl.u32 %v248, 7
      %v250 = vsub.s32 0, %v249
      %v251 = vrot.slane %v246, %v250
      %253 = vmatprep.subr.mxu0 0.0
      %254 = vmatpush1.msra.mxu0 %v245
      %255 = vmatprep.subr.mxu0 0.0
      %256 = vmatpush1.msra.mxu0 %v244
      %257 = vmatprep.subr.mxu0 0.0
      %258 = vmatpush1.msra.mxu0 %v243
      %259 = vmatprep.subr.mxu0 0.0
      %260 = vmatpush1.msra.mxu0 %v242
      %261 = vmatprep.subr.mxu0 0.0
      %262 = vmatpush1.msra.mxu0 %v241
      %263 = vmatprep.subr.mxu0 0.0
      %264 = vmatpush1.msra.mxu0 %v240
      %265 = vmatprep.subr.mxu0 0.0
      %266 = vmatpush1.msra.mxu0 %v239
      %267 = vmatprep.subr.mxu0 0.0
      %268 = vmatpush1.msra.mxu0 %v238
      %269 = vmatprep.subr.mxu0 0.0
      %270 = vmatpush1.msra.mxu0 %v237
      %271 = vmatprep.subr.mxu0 0.0
      %272 = vmatpush1.msra.mxu0 %v236
      %273 = vmatprep.subr.mxu0 0.0
      %274 = vmatpush1.msra.mxu0 %v235
      %275 = vmatprep.subr.mxu0 0.0
      %276 = vmatpush1.msra.mxu0 %v234
      %277 = vmatprep.subr.mxu0 0.0
      %278 = vmatpush1.msra.mxu0 %v233
      %279 = vmatprep.subr.mxu0 0.0
      %280 = vmatpush1.msra.mxu0 %v232
      %281 = vmatprep.subr.mxu0 0.0
      %282 = vmatpush1.msra.mxu0 %v231
      %283 = vmatprep.subr.mxu0 0.0
      %284 = vmatpush1.msra.mxu0 %v230
      %285 = vmatprep.subr.mxu0 0.0
      %286 = vmatpush2.msra.mxu0 0.0
      %287 = vmatprep.subr.mxu0 0.0
      %288 = vmatpush2.msra.mxu0 0.0
      %289 = vmatprep.subr.mxu0 0.0
      %290 = vmatpush2.msra.mxu0 0.0
      %291 = vmatprep.subr.mxu0 0.0
      %292 = vmatpush2.msra.mxu0 0.0
      %293 = vmatprep.subr.mxu0 0.0
      %294 = vmatpush2.msra.mxu0 0.0
      %295 = vmatprep.subr.mxu0 0.0
      %296 = vmatpush2.msra.mxu0 0.0
      %297 = vmatprep.subr.mxu0 0.0
      %298 = vmatpush2.msra.mxu0 0.0
      %299 = vmatprep.subr.mxu0 0.0
      %300 = vmatpush2.msra.mxu0 0.0
      %301 = vmatprep.subr.mxu0 0.0
      %302 = vmatpush2.msra.mxu0 0.0
      %303 = vmatprep.subr.mxu0 0.0
      %304 = vmatpush2.msra.mxu0 0.0
      %305 = vmatprep.subr.mxu0 0.0
      %306 = vmatpush2.msra.mxu0 0.0
      %307 = vmatprep.subr.mxu0 0.0
      %308 = vmatpush2.msra.mxu0 0.0
      %309 = vmatprep.subr.mxu0 0.0
      %310 = vmatpush2.msra.mxu0 0.0
      %311 = vmatprep.subr.mxu0 0.0
      %312 = vmatpush2.msra.mxu0 0.0
      %313 = vmatprep.subr.mxu0 0.0
      %314 = vmatpush2.msra.mxu0 0.0
      %315 = vmatprep.subr.mxu0 0.0
      %316 = vmatpush2.msra.mxu0 0.0
      %317 = vmatprep.mubr.f32.mxu0 0.0
      %318 = vmatmul.mubr.f32.gmra.mxu0 %v229
      %v319 = vpop.f32.mrf.mxu0
      %v320 = vadd.f32 %v251, %v319
      %v321 = vpop.f32.mrf.mxu0
      %322 = vdwg.mxu0
      %v323 = vmax.f32 %v320, 0.0
      %v324 = vld [vmem:[#allocation9] sm:$0xff]
      %v325 = vld [vmem:[#allocation9 + $0x8] sm:$0xff]
      %v326 = vld [vmem:[#allocation9 + $0x10] sm:$0xff]
      %v327 = vld [vmem:[#allocation9 + $0x18] sm:$0xff]
      %v328 = vld [vmem:[#allocation9 + $0x20] sm:$0xff]
      %v329 = vld [vmem:[#allocation9 + $0x28] sm:$0xff]
      %v330 = vld [vmem:[#allocation9 + $0x30] sm:$0xff]
      %v331 = vld [vmem:[#allocation9 + $0x38] sm:$0xff]
      %v332 = vld [vmem:[#allocation9 + $0x40] sm:$0xff]
      %v333 = vld [vmem:[#allocation9 + $0x48] sm:$0xff]
      %v334 = vld [vmem:[#allocation9 + $0x50] sm:$0xff]
      %v335 = vld [vmem:[#allocation9 + $0x58] sm:$0xff]
      %v336 = vld [vmem:[#allocation9 + $0x60] sm:$0xff]
      %v337 = vld [vmem:[#allocation9 + $0x68] sm:$0xff]
      %v338 = vld [vmem:[#allocation9 + $0x70] sm:$0xff]
      %v339 = vld [vmem:[#allocation9 + $0x78] sm:$0xff]
      %v340 = vld [vmem:[%s5] sm:$0x1]
      %v342 = vlaneseq
      %v343 = vshrl.u32 %v342, 7
      %v344 = vsub.s32 0, %v343
      %v345 = vrot.slane %v340, %v344
      %347 = vmatprep.subr.mxu0 0.0
      %348 = vmatpush1.msra.mxu0 %v339
      %349 = vmatprep.subr.mxu0 0.0
      %350 = vmatpush1.msra.mxu0 %v338
      %351 = vmatprep.subr.mxu0 0.0
      %352 = vmatpush1.msra.mxu0 %v337
      %353 = vmatprep.subr.mxu0 0.0
      %354 = vmatpush1.msra.mxu0 %v336
      %355 = vmatprep.subr.mxu0 0.0
      %356 = vmatpush1.msra.mxu0 %v335
      %357 = vmatprep.subr.mxu0 0.0
      %358 = vmatpush1.msra.mxu0 %v334
      %359 = vmatprep.subr.mxu0 0.0
      %360 = vmatpush1.msra.mxu0 %v333
      %361 = vmatprep.subr.mxu0 0.0
      %362 = vmatpush1.msra.mxu0 %v332
      %363 = vmatprep.subr.mxu0 0.0
      %364 = vmatpush1.msra.mxu0 %v331
      %365 = vmatprep.subr.mxu0 0.0
      %366 = vmatpush1.msra.mxu0 %v330
      %367 = vmatprep.subr.mxu0 0.0
      %368 = vmatpush1.msra.mxu0 %v329
      %369 = vmatprep.subr.mxu0 0.0
      %370 = vmatpush1.msra.mxu0 %v328
      %371 = vmatprep.subr.mxu0 0.0
      %372 = vmatpush1.msra.mxu0 %v327
      %373 = vmatprep.subr.mxu0 0.0
      %374 = vmatpush1.msra.mxu0 %v326
      %375 = vmatprep.subr.mxu0 0.0
      %376 = vmatpush1.msra.mxu0 %v325
      %377 = vmatprep.subr.mxu0 0.0
      %378 = vmatpush1.msra.mxu0 %v324
      %379 = vmatprep.subr.mxu0 0.0
      %380 = vmatpush2.msra.mxu0 0.0
      %381 = vmatprep.subr.mxu0 0.0
      %382 = vmatpush2.msra.mxu0 0.0
      %383 = vmatprep.subr.mxu0 0.0
      %384 = vmatpush2.msra.mxu0 0.0
      %385 = vmatprep.subr.mxu0 0.0
      %386 = vmatpush2.msra.mxu0 0.0
      %387 = vmatprep.subr.mxu0 0.0
      %388 = vmatpush2.msra.mxu0 0.0
      %389 = vmatprep.subr.mxu0 0.0
      %390 = vmatpush2.msra.mxu0 0.0
      %391 = vmatprep.subr.mxu0 0.0
      %392 = vmatpush2.msra.mxu0 0.0
      %393 = vmatprep.subr.mxu0 0.0
      %394 = vmatpush2.msra.mxu0 0.0
      %395 = vmatprep.subr.mxu0 0.0
      %396 = vmatpush2.msra.mxu0 0.0
      %397 = vmatprep.subr.mxu0 0.0
      %398 = vmatpush2.msra.mxu0 0.0
      %399 = vmatprep.subr.mxu0 0.0
      %400 = vmatpush2.msra.mxu0 0.0
      %401 = vmatprep.subr.mxu0 0.0
      %402 = vmatpush2.msra.mxu0 0.0
      %403 = vmatprep.subr.mxu0 0.0
      %404 = vmatpush2.msra.mxu0 0.0
      %405 = vmatprep.subr.mxu0 0.0
      %406 = vmatpush2.msra.mxu0 0.0
      %407 = vmatprep.subr.mxu0 0.0
      %408 = vmatpush2.msra.mxu0 0.0
      %409 = vmatprep.subr.mxu0 0.0
      %410 = vmatpush2.msra.mxu0 0.0
      %411 = vmatprep.mubr.f32.mxu0 0.0
      %412 = vmatmul.mubr.f32.gmra.mxu0 %v323
      %v413 = vpop.f32.mrf.mxu0
      %v414 = vadd.f32 %v345, %v413
      %v415 = vpop.f32.mrf.mxu0
      %416 = vdwg.mxu0
      %417 = vst [vmem:[#allocation11] sm:$0xff] %v414
    $region49: #{tpu_custom_call.1} parent=1 // pred_fallthru
      _
    // Predicated region
    $region50: #{tpu_custom_call.1} parent=1 // pred_check
      _
    $region51: #{tpu_custom_call.1} parent=1 // pred_check_branch
      %419 = sbr.rel (0) target = $region53
    $region52: #{tpu_custom_call.1} parent=1 // pred_region
      %s421 = ssub.s32 128, 128
      %422 = vsyncadd [#allocation5], %s421
      %s424 = sshll.u32 [#allocation11], 4
      %s425 = int_to_ptr.vmem [resolvable:$true] %s424
      %427 = dma.vmem_to_hbm [thread:$0]  %s425, 128, %s6, [#allocation5]
    $region53: #{tpu_custom_call.1} parent=1 // pred_fallthru
      _
    // Predicated region
    $region54: #{tpu_custom_call.1} parent=1 // pred_check
      _
    $region55: #{tpu_custom_call.1} parent=1 // pred_check_branch
      %429 = sbr.rel (0) target = $region57
    $region56: #{tpu_custom_call.1} parent=1 // pred_region
      %430 = dma.done [#allocation5], 128
    $region57: #{tpu_custom_call.1} parent=1 // pred_fallthru
      _
    %431 = vsyncpa [#allocation4], 1
    %432 = vsyncpa [#allocation7], 1
    %433 = vsyncpa [#allocation10], 1
    %434 = vsyncpa [#allocation5], 1

</llo_original>
